<compile_context>
chip_gen: v5e
topology: v5e:2x2
jax: 0.10.0
libtpu: 0.0.40
codegen_flags: <defaults>
</compile_context>

<pallas_src>
import math
import functools

import jax
import jax.numpy as jnp
from jax import lax
from jax.experimental import pallas as pl
from jax.experimental.pallas import tpu as pltpu


# --------------------- fused whole-stack kernel (one grid step = one layer
# --------------------- of one batch element) --------------------------------

def _ukt_stack_kernel(x_ref, y_ref, sp2_ref,
                      wk_ref, bk_ref, wv_ref, bv_ref, wo_ref, bo_ref,
                      w1_ref, b1_ref, w2_ref, b2_ref,
                      out_ref, x_scr,
                      *, S, D, H, d_k):
    layer = pl.program_id(1)
    n_layers = pl.num_programs(1)
    D2 = 2 * D
    dk2 = 2 * d_k
    inv_sqrt_dk = 1.0 / math.sqrt(d_k)
    bf16 = jnp.bfloat16

    # layer 0: load the real input into the carried residual-stream scratch
    @pl.when(layer == 0)
    def _():
        x_scr[...] = x_ref[0]

    x = x_scr[...]                       # (S, 2D) f32, [mean | cov]
    y = y_ref[0]                         # (S, 2D) f32, [mean | cov]

    # ---- fused K(=Q, kq_same) / V projections (bf16 MXU, f32 accum) --------
    kq = jnp.dot(x.astype(bf16), wk_ref[0],
                 preferred_element_type=jnp.float32) + bk_ref[0]
    v = jnp.dot(y.astype(bf16), wv_ref[0],
                preferred_element_type=jnp.float32) + bv_ref[0]

    # ---- shared (S, S) constants, rebuilt in-kernel (no HBM table) ---------
    row = lax.broadcasted_iota(jnp.int32, (S, S), 0)
    col = lax.broadcasted_iota(jnp.int32, (S, S), 1)
    allow = col < row                          # True = may attend (strict past)
    row0 = row == 0                            # fully-masked / zero_pad row
    posabs = jnp.abs(col - row).astype(jnp.float32)
    upper = (row > col).astype(bf16)           # U[k, j] = 1 if k > j
    neg_big = jnp.float32(-1e32)

    lane2 = lax.broadcasted_iota(jnp.int32, (S, dk2), 1)
    is_mean2 = lane2 < d_k                     # [mean | cov] split of a head slab

    laneD2 = lax.broadcasted_iota(jnp.int32, (S, D2), 1)
    is_mean = laneD2 < D
    inv_D = 1.0 / D

    def msoftmax(s):                           # masked softmax, approx recip
        sm = jnp.where(allow, s, neg_big)
        m = jnp.max(sm, axis=-1, keepdims=True)
        e = jnp.exp(sm - m)
        return e * pl.reciprocal(jnp.sum(e, axis=-1, keepdims=True), approx=True)

    def dual_ln(z):                            # LN(mean) | LN(elu(cov)+1), eps=1e-5
        z2 = jnp.where(is_mean, z,
                       jnp.exp(jnp.minimum(z, 0.0)) + jnp.maximum(z, 0.0))
        zm = jnp.where(is_mean, z2, 0.0)
        zc = z2 - zm
        mu = jnp.where(is_mean,
                       jnp.sum(zm, axis=-1, keepdims=True) * inv_D,
                       jnp.sum(zc, axis=-1, keepdims=True) * inv_D)
        cen = z2 - mu
        cm = jnp.where(is_mean, cen, 0.0)
        cc = cen - cm
        var = jnp.where(is_mean,
                        jnp.sum(cm * cm, axis=-1, keepdims=True) * inv_D,
                        jnp.sum(cc * cc, axis=-1, keepdims=True) * inv_D)
        return cen * lax.rsqrt(var + 1e-5)

    # ---- per-head Wasserstein attention (H static, unrolled) ----------------
    wo = wo_ref[0]                             # (2D, 2D) bf16, rows head-major
    acc = jnp.zeros((S, D2), jnp.float32)
    for h in range(H):
        lo = h * dk2
        sl = kq[:, lo:lo + dk2]                # (S, 2dk): [km_h | kc_h]
        # [mean | sqrt(clamp(cov))] for the cross term of -wasserstein dist
        kcat = jnp.where(is_mean2, sl, jnp.sqrt(jnp.maximum(sl, 1e-24)))
        # sum(mean^2) + sum(cov)   (diagonal terms)
        diag = jnp.sum(jnp.where(is_mean2, sl * sl, sl), axis=-1, keepdims=True)
        kcb = kcat.astype(bf16)
        sdot = lax.dot_general(kcb, kcb, (((1,), (1,)), ((), ())),
                               preferred_element_type=jnp.float32)   # (S, S)
        scores = (2.0 * sdot - diag - diag.T) * inv_sqrt_dk

        # distance-decay (torch no_grad block): masked softmax, then
        # (disttotal - distcum) == p @ strict_upper_tri; only row 0 needs fixing
        p = msoftmax(scores)
        p = jnp.where(row0, 0.0, p)
        diff = jnp.dot(p.astype(bf16), upper, preferred_element_type=jnp.float32)
        arg = jnp.maximum(diff, 0.0) * posabs * sp2_ref[layer, h]
        teff = jnp.clip(jnp.exp(-jnp.sqrt(arg)), 1e-5, 1e5)

        sc = msoftmax(scores * teff)
        sc = jnp.where(row0, 0.0, sc)          # zero_pad (mask=0 path)
        # dropout: identity (inference)

        vh = v[:, lo:lo + dk2].astype(bf16)    # (S, 2dk): [vm_h | vc_h]
        o1 = jnp.dot(sc.astype(bf16), vh, preferred_element_type=jnp.float32)
        o2 = jnp.dot((sc * sc).astype(bf16), vh, preferred_element_type=jnp.float32)
        oh = jnp.where(is_mean2, o1, o2)       # [sc@vm_h | sc^2@vc_h]
        # accumulate the output projection per head (rows of Wo are head-major)
        acc = acc + jnp.dot(oh.astype(bf16), wo[lo:lo + dk2, :],
                            preferred_element_type=jnp.float32)
    att = acc + bo_ref[0]

    # ---- residual + LN1, FFN + LN2 (LN2 on FFN output only, as in torch) ---
    q1 = dual_ln(x + att)
    h1 = jnp.maximum(jnp.dot(q1.astype(bf16), w1_ref[0],
                             preferred_element_type=jnp.float32) + b1_ref[0], 0.0)
    ff = jnp.dot(h1.astype(bf16), w2_ref[0],
                 preferred_element_type=jnp.float32) + b2_ref[0]
    new_x = dual_ln(ff)

    x_scr[...] = new_x                          # carry to next layer

    @pl.when(layer == n_layers - 1)
    def _():
        out_ref[...] = new_x.reshape(1, S, D2)


# ------------------------------ forward wrapper ------------------------------

def architecture_forward(params, q_mean, q_cov, qa_mean, qa_cov):
    B, S, D = q_mean.shape
    D2 = 2 * D
    w = params['stacked']
    NB, H = w['sp2'].shape
    FF2 = w['W1'].shape[-1]
    d_k = D // H

    pe_m = params['pe_mean'][:S][None]
    pe_c = params['pe_cov'][:S][None]
    # queries/keys stream and values stream, [mean | elu(cov)+1] concatenated
    x_state = jnp.concatenate(
        [q_mean + pe_m, jax.nn.elu(q_cov + pe_c) + 1.0], axis=-1)
    y_state = jnp.concatenate(
        [qa_mean + pe_m, jax.nn.elu(qa_cov + pe_c) + 1.0], axis=-1)

    kernel = functools.partial(_ukt_stack_kernel, S=S, D=D, H=H, d_k=d_k)

    xmap = lambda b, l: (b, 0, 0)     # batch-blocked, constant across layers
    lmap = lambda b, l: (l, 0, 0)     # layer-blocked weights

    in_specs = [
        pl.BlockSpec((1, S, D2), xmap),                              # x
        pl.BlockSpec((1, S, D2), xmap),                              # y
        pl.BlockSpec(memory_space=pltpu.MemorySpace.SMEM),           # sp2 (NB,H)
        pl.BlockSpec((1, D2, D2), lmap),                             # Wk
        pl.BlockSpec((1, 1, D2), lmap),                              # bk
        pl.BlockSpec((1, D2, D2), lmap),                             # Wv
        pl.BlockSpec((1, 1, D2), lmap),                              # bv
        pl.BlockSpec((1, D2, D2), lmap),                             # Wo
        pl.BlockSpec((1, 1, D2), lmap),                              # bo
        pl.BlockSpec((1, D2, FF2), lmap),                            # W1
        pl.BlockSpec((1, 1, FF2), lmap),                             # b1
        pl.BlockSpec((1, FF2, D2), lmap),                            # W2
        pl.BlockSpec((1, 1, D2), lmap),                              # b2
    ]

    # rough VMEM working set + advisory cost estimate
    w_bytes = 2 * ((3 * D2 * D2 + 2 * D2 * FF2) * 2 + (4 * D2 + FF2) * 4)
    act_bytes = 2 * 3 * S * D2 * 4 + S * D2 * 4
    tmp_bytes = (12 * S * S + 8 * S * D2) * 4
    vmem_limit = min(max(w_bytes + act_bytes + tmp_bytes + (4 << 20), 32 << 20),
                     64 << 20)

    dk2 = 2 * d_k
    per_step = (2 * 2 * S * D2 * D2
                + H * (2 * S * S * dk2 + 2 * S * S * S
                       + 2 * 2 * S * S * dk2 + 2 * S * dk2 * D2)
                + 2 * 2 * S * D2 * FF2)
    flops = int(B * NB * per_step)
    trans = int(B * NB * (H * 4 * S * S + 4 * S * D2))
    bytes_acc = int(3 * B * S * D2 * 4
                    + NB * ((3 * D2 * D2 + 2 * D2 * FF2) * 2
                            + (4 * D2 + FF2) * 4 + H * 4))

    out = pl.pallas_call(
        kernel,
        out_shape=jax.ShapeDtypeStruct((B, S, D2), jnp.float32),
        grid=(B, NB),
        in_specs=in_specs,
        out_specs=pl.BlockSpec((1, S, D2), xmap),
        scratch_shapes=[pltpu.VMEM((S, D2), jnp.float32)],
        compiler_params=pltpu.CompilerParams(
            dimension_semantics=("parallel", "arbitrary"),
            vmem_limit_bytes=vmem_limit),
        cost_estimate=pl.CostEstimate(flops=flops, transcendentals=trans,
                                      bytes_accessed=bytes_acc),
    )(x_state, y_state, w['sp2'],
      w['Wk'], w['bk'], w['Wv'], w['bv'], w['Wo'], w['bo'],
      w['W1'], w['b1'], w['W2'], w['b2'])

    return out[..., :D], out[..., D:]


# ------------------------------ init helpers ---------------------------------

def cosine_pe(max_len, d_model):
    # For even d_model every column of pe is overwritten -> fully deterministic.
    position = jnp.arange(max_len, dtype=jnp.float32)[:, None]
    div_term = jnp.exp(jnp.arange(0, d_model, 2, dtype=jnp.float32)
                       * (-(math.log(10000.0) / d_model)))
    ang = position * div_term
    return jnp.stack([jnp.sin(ang), jnp.cos(ang)], axis=-1).reshape(max_len,
                                                                    d_model)


def xavier_uniform(key, out_f, in_f):
    limit = math.sqrt(6.0 / (in_f + out_f))
    return jax.random.uniform(key, (out_f, in_f), minval=-limit, maxval=limit,
                              dtype=jnp.float32)


def init_raw_params(key, n_blocks, d_model, d_ff, n_heads, seq_len):
    """Parameters in the torch nn.Linear layout (Dout, Din)."""
    params = {'pe_mean': cosine_pe(seq_len, d_model),
              'pe_cov': cosine_pe(seq_len, d_model),
              'blocks': []}
    zeros = lambda n: jnp.zeros((n,), jnp.float32)
    glim = math.sqrt(3.0)   # torch xavier_uniform_ on (H,1,1): fan_in=fan_out=1
    for _ in range(n_blocks):
        key, *ks = jax.random.split(key, 12)
        blk = {
            'Wk_mean': xavier_uniform(ks[0], d_model, d_model), 'bk_mean': zeros(d_model),
            'Wk_cov':  xavier_uniform(ks[1], d_model, d_model), 'bk_cov':  zeros(d_model),
            'Wv_mean': xavier_uniform(ks[2], d_model, d_model), 'bv_mean': zeros(d_model),
            'Wv_cov':  xavier_uniform(ks[3], d_model, d_model), 'bv_cov':  zeros(d_model),
            'Wout_mean': xavier_uniform(ks[4], d_model, d_model), 'bout_mean': zeros(d_model),
            'Wout_cov':  xavier_uniform(ks[5], d_model, d_model), 'bout_cov':  zeros(d_model),
            'gammas': jax.random.uniform(ks[6], (n_heads,), minval=-glim,
                                         maxval=glim, dtype=jnp.float32),
            'W1_mean': xavier_uniform(ks[7], d_ff, d_model), 'b1_mean': zeros(d_ff),
            'W1_cov':  xavier_uniform(ks[8], d_ff, d_model), 'b1_cov':  zeros(d_ff),
            'W2_mean': xavier_uniform(ks[9], d_model, d_ff), 'b2_mean': zeros(d_model),
            'W2_cov':  xavier_uniform(ks[10], d_model, d_ff), 'b2_cov': zeros(d_model),
        }
        params['blocks'].append(blk)
    return params


def fuse_params(raw):
    """Pre-transpose & block-diagonally fuse the (mean, cov) Linear pairs,
    permute columns to a head-major [mean_h | cov_h] layout, stack all layers
    on a leading axis, cast weights to bf16 and store softplus(gamma)^2."""
    blocks = raw['blocks']
    D = blocks[0]['Wk_mean'].shape[0]
    H = blocks[0]['gammas'].shape[0]
    dk = D // H
    perm = []
    for h in range(H):
        perm.extend(range(h * dk, (h + 1) * dk))          # mean cols of head h
        perm.extend(range(D + h * dk, D + (h + 1) * dk))  # cov cols of head h
    perm = jnp.array(perm, dtype=jnp.int32)

    def bdT(wm, wc):                     # torch (Dout,Din) pair -> (2Din, 2Dout)
        a, b = wm.T, wc.T
        z1 = jnp.zeros((a.shape[0], b.shape[1]), jnp.float32)
        z2 = jnp.zeros((b.shape[0], a.shape[1]), jnp.float32)
        return jnp.concatenate([jnp.concatenate([a, z1], 1),
                                jnp.concatenate([z2, b], 1)], 0)

    def catb(ba, bb):
        return jnp.concatenate([ba, bb]).reshape(1, -1)

    Wk, bk, Wv, bv, Wo, bo, W1, b1, W2, b2, sp2 = ([] for _ in range(11))
    for blk in blocks:
        Wk.append(bdT(blk['Wk_mean'], blk['Wk_cov'])[:, perm])
        bk.append(catb(blk['bk_mean'], blk['bk_cov'])[:, perm])
        Wv.append(bdT(blk['Wv_mean'], blk['Wv_cov'])[:, perm])
        bv.append(catb(blk['bv_mean'], blk['bv_cov'])[:, perm])
        Wo.append(bdT(blk['Wout_mean'], blk['Wout_cov'])[perm, :])
        bo.append(catb(blk['bout_mean'], blk['bout_cov']))
        W1.append(bdT(blk['W1_mean'], blk['W1_cov']))
        b1.append(catb(blk['b1_mean'], blk['b1_cov']))
        W2.append(bdT(blk['W2_mean'], blk['W2_cov']))
        b2.append(catb(blk['b2_mean'], blk['b2_cov']))
        sp = jax.nn.softplus(blk['gammas'])
        sp2.append(sp * sp)

    bf = jnp.bfloat16
    stacked = {
        'Wk': jnp.stack(Wk).astype(bf), 'bk': jnp.stack(bk),
        'Wv': jnp.stack(Wv).astype(bf), 'bv': jnp.stack(bv),
        'Wo': jnp.stack(Wo).astype(bf), 'bo': jnp.stack(bo),
        'W1': jnp.stack(W1).astype(bf), 'b1': jnp.stack(b1),
        'W2': jnp.stack(W2).astype(bf), 'b2': jnp.stack(b2),
        'sp2': jnp.stack(sp2),                       # (NB, H) f32
    }
    return {'pe_mean': raw['pe_mean'], 'pe_cov': raw['pe_cov'],
            'stacked': stacked}


# ---------------------------------- main --------------------------------------

if __name__ == "__main__":
    # batch, seq, d_model, heads, d_ff, blocks  (S % 8 == 0, 2*D and 2*FF % 128 == 0)
    B, S, D, H, FF, NB = 2, 16, 64, 2, 64, 2
    key = jax.random.PRNGKey(0)
    kp, k1, k2, k3, k4 = jax.random.split(key, 5)
    raw = init_raw_params(kp, NB, D, FF, H, seq_len=S)
    params = fuse_params(raw)

    q_mean = jax.random.normal(k1, (B, S, D), jnp.float32)
    q_cov = jax.random.normal(k2, (B, S, D), jnp.float32)
    qa_mean = jax.random.normal(k3, (B, S, D), jnp.float32)
    qa_cov = jax.random.normal(k4, (B, S, D), jnp.float32)

    fwd = jax.jit(architecture_forward)
    x_mean, x_cov = fwd(params, q_mean, q_cov, qa_mean, qa_cov)
    jax.block_until_ready((x_mean, x_cov))

    assert x_mean.shape == (B, S, D) and x_cov.shape == (B, S, D)
    assert bool(jnp.all(jnp.isfinite(x_mean))) and bool(jnp.all(jnp.isfinite(x_cov)))
    print("KERNEL_OK")
</pallas_src>

<mosaic_0001>
module attributes {stable_mosaic.version = 11 : i64} {
  func.func @_ukt_stack_kernel(%arg0: i32, %arg1: i32, %arg2: memref<1x16x128xf32, #tpu.memory_space<vmem>>, %arg3: memref<1x16x128xf32, #tpu.memory_space<vmem>>, %arg4: memref<2x2xf32, #tpu.memory_space<smem>>, %arg5: memref<1x128x128xbf16, #tpu.memory_space<vmem>>, %arg6: memref<1x1x128xf32, #tpu.memory_space<vmem>>, %arg7: memref<1x128x128xbf16, #tpu.memory_space<vmem>>, %arg8: memref<1x1x128xf32, #tpu.memory_space<vmem>>, %arg9: memref<1x128x128xbf16, #tpu.memory_space<vmem>>, %arg10: memref<1x1x128xf32, #tpu.memory_space<vmem>>, %arg11: memref<1x128x128xbf16, #tpu.memory_space<vmem>>, %arg12: memref<1x1x128xf32, #tpu.memory_space<vmem>>, %arg13: memref<1x128x128xbf16, #tpu.memory_space<vmem>>, %arg14: memref<1x1x128xf32, #tpu.memory_space<vmem>>, %arg15: memref<1x16x128xf32, #tpu.memory_space<vmem>>, %arg16: memref<16x128xf32, #tpu.memory_space<vmem>>) attributes {dimension_semantics = [#tpu.dimension_semantics<parallel>, #tpu.dimension_semantics<arbitrary>], iteration_bounds = array<i64: 2, 2>, scalar_prefetch = 0 : i64, scratch_operands = 1 : i64, tpu.core_type = #tpu.core_type<tc>, window_params = [{transform_indices = @transform_0, window_bounds = array<i64: 1, 16, 128>}, {transform_indices = @transform_1, window_bounds = array<i64: 1, 16, 128>}, {transform_indices = @transform_2, window_bounds = array<i64: 2, 2>}, {transform_indices = @transform_3, window_bounds = array<i64: 1, 128, 128>}, {transform_indices = @transform_4, window_bounds = array<i64: 1, 1, 128>}, {transform_indices = @transform_5, window_bounds = array<i64: 1, 128, 128>}, {transform_indices = @transform_6, window_bounds = array<i64: 1, 1, 128>}, {transform_indices = @transform_7, window_bounds = array<i64: 1, 128, 128>}, {transform_indices = @transform_8, window_bounds = array<i64: 1, 1, 128>}, {transform_indices = @transform_9, window_bounds = array<i64: 1, 128, 128>}, {transform_indices = @transform_10, window_bounds = array<i64: 1, 1, 128>}, {transform_indices = @transform_11, window_bounds = array<i64: 1, 128, 128>}, {transform_indices = @transform_12, window_bounds = array<i64: 1, 1, 128>}, {transform_indices = @transform_13, window_bounds = array<i64: 1, 16, 128>}]} {
    %c0_i32 = arith.constant 0 : i32
    %0 = arith.cmpi eq, %arg1, %c0_i32 : i32
    %1 = arith.extui %0 : i1 to i32
    %c0_i32_0 = arith.constant 0 : i32
    %2 = arith.cmpi ne, %1, %c0_i32_0 : i32
    scf.if %2 {
      %c0_113 = arith.constant 0 : index
      %c0_114 = arith.constant 0 : index
      %c0_115 = arith.constant 0 : index
      %318 = vector.load %arg2[%c0_113, %c0_114, %c0_115] : memref<1x16x128xf32, #tpu.memory_space<vmem>>, vector<1x16x128xf32>
      %319 = vector.shape_cast %318 : vector<1x16x128xf32> to vector<16x128xf32>
      %c0_116 = arith.constant 0 : index
      %c0_117 = arith.constant 0 : index
      %320 = vector.load %arg16[%c0_116, %c0_117] : memref<16x128xf32, #tpu.memory_space<vmem>>, vector<16x128xf32>
      tpu.vector_store %arg16[%c0_116, %c0_117], %319 {strides = array<i32>} : memref<16x128xf32, #tpu.memory_space<vmem>>, vector<16x128xf32>,
    } else {
    }
    %c0 = arith.constant 0 : index
    %c0_1 = arith.constant 0 : index
    %3 = vector.load %arg16[%c0, %c0_1] : memref<16x128xf32, #tpu.memory_space<vmem>>, vector<16x128xf32>
    %c0_2 = arith.constant 0 : index
    %c0_3 = arith.constant 0 : index
    %c0_4 = arith.constant 0 : index
    %4 = vector.load %arg3[%c0_2, %c0_3, %c0_4] : memref<1x16x128xf32, #tpu.memory_space<vmem>>, vector<1x16x128xf32>
    %5 = vector.shape_cast %4 : vector<1x16x128xf32> to vector<16x128xf32>
    %6 = arith.truncf %3 : vector<16x128xf32> to vector<16x128xbf16>
    %c0_5 = arith.constant 0 : index
    %c0_6 = arith.constant 0 : index
    %c0_7 = arith.constant 0 : index
    %7 = vector.load %arg5[%c0_5, %c0_6, %c0_7] : memref<1x128x128xbf16, #tpu.memory_space<vmem>>, vector<1x128x128xbf16>
    %8 = vector.shape_cast %7 : vector<1x128x128xbf16> to vector<128x128xbf16>
    %cst = arith.constant dense<0.000000e+00> : vector<16x128xf32>
    %9 = tpu.matmul %6, %8, %cst {dimension_numbers = #tpu.dot_dimension_numbers<[1], [0], [0], [1], [0, 0, 1, 1], [], []>} : vector<16x128xbf16>, vector<128x128xbf16>, vector<16x128xf32> -> vector<16x128xf32>
    %c0_8 = arith.constant 0 : index
    %c0_9 = arith.constant 0 : index
    %c0_10 = arith.constant 0 : index
    %10 = vector.load %arg6[%c0_8, %c0_9, %c0_10] : memref<1x1x128xf32, #tpu.memory_space<vmem>>, vector<1x1x128xf32>
    %11 = vector.shape_cast %10 : vector<1x1x128xf32> to vector<1x128xf32>
    %12 = vector.broadcast %11 : vector<1x128xf32> to vector<16x128xf32>
    %13 = arith.addf %9, %12 : vector<16x128xf32>
    %14 = arith.truncf %5 : vector<16x128xf32> to vector<16x128xbf16>
    %c0_11 = arith.constant 0 : index
    %c0_12 = arith.constant 0 : index
    %c0_13 = arith.constant 0 : index
    %15 = vector.load %arg7[%c0_11, %c0_12, %c0_13] : memref<1x128x128xbf16, #tpu.memory_space<vmem>>, vector<1x128x128xbf16>
    %16 = vector.shape_cast %15 : vector<1x128x128xbf16> to vector<128x128xbf16>
    %cst_14 = arith.constant dense<0.000000e+00> : vector<16x128xf32>
    %17 = tpu.matmul %14, %16, %cst_14 {dimension_numbers = #tpu.dot_dimension_numbers<[1], [0], [0], [1], [0, 0, 1, 1], [], []>} : vector<16x128xbf16>, vector<128x128xbf16>, vector<16x128xf32> -> vector<16x128xf32>
    %c0_15 = arith.constant 0 : index
    %c0_16 = arith.constant 0 : index
    %c0_17 = arith.constant 0 : index
    %18 = vector.load %arg8[%c0_15, %c0_16, %c0_17] : memref<1x1x128xf32, #tpu.memory_space<vmem>>, vector<1x1x128xf32>
    %19 = vector.shape_cast %18 : vector<1x1x128xf32> to vector<1x128xf32>
    %20 = vector.broadcast %19 : vector<1x128xf32> to vector<16x128xf32>
    %21 = arith.addf %17, %20 : vector<16x128xf32>
    %22 = tpu.iota {dimensions = array<i32: 0>} : vector<16x16xi32>
    %23 = tpu.iota {dimensions = array<i32: 1>} : vector<16x16xi32>
    %24 = arith.cmpi slt, %23, %22 : vector<16x16xi32>
    %c0_i32_18 = arith.constant 0 : i32
    %25 = vector.broadcast %c0_i32_18 : i32 to vector<16x16xi32>
    %26 = arith.cmpi eq, %22, %25 : vector<16x16xi32>
    %27 = arith.subi %23, %22 : vector<16x16xi32>
    %28 = math.absi %27 : vector<16x16xi32>
    %29 = arith.sitofp %28 : vector<16x16xi32> to vector<16x16xf32>
    %30 = arith.cmpi sgt, %22, %23 : vector<16x16xi32>
    %31 = arith.extui %30 : vector<16x16xi1> to vector<16x16xi32>
    %32 = arith.sitofp %31 : vector<16x16xi32> to vector<16x16xf32>
    %33 = arith.truncf %32 : vector<16x16xf32> to vector<16x16xbf16>
    %34 = tpu.iota {dimensions = array<i32: 1>} : vector<16x64xi32>
    %c32_i32 = arith.constant 32 : i32
    %35 = vector.broadcast %c32_i32 : i32 to vector<16x64xi32>
    %36 = arith.cmpi slt, %34, %35 : vector<16x64xi32>
    %37 = tpu.iota {dimensions = array<i32: 1>} : vector<16x128xi32>
    %c64_i32 = arith.constant 64 : i32
    %38 = vector.broadcast %c64_i32 : i32 to vector<16x128xi32>
    %39 = arith.cmpi slt, %37, %38 : vector<16x128xi32>
    %c0_19 = arith.constant 0 : index
    %c0_20 = arith.constant 0 : index
    %c0_21 = arith.constant 0 : index
    %40 = vector.load %arg9[%c0_19, %c0_20, %c0_21] : memref<1x128x128xbf16, #tpu.memory_space<vmem>>, vector<1x128x128xbf16>
    %41 = vector.shape_cast %40 : vector<1x128x128xbf16> to vector<128x128xbf16>
    %cst_22 = arith.constant 0.000000e+00 : f32
    %42 = vector.broadcast %cst_22 : f32 to vector<16x128xf32>
    %43 = vector.extract_strided_slice %13 {offsets = [0, 0], sizes = [16, 64], strides = [1, 1]} : vector<16x128xf32> to vector<16x64xf32>
    %cst_23 = arith.constant 1.000000e-24 : f32
    %44 = vector.broadcast %cst_23 : f32 to vector<16x64xf32>
    %45 = arith.maximumf %43, %44 : vector<16x64xf32>
    %46 = math.sqrt %45 : vector<16x64xf32>
    %47 = arith.select %36, %43, %46 : vector<16x64xi1>, vector<16x64xf32>
    %48 = arith.mulf %43, %43 : vector<16x64xf32>
    %49 = arith.select %36, %48, %43 : vector<16x64xi1>, vector<16x64xf32>
    %cst_24 = arith.constant dense<0.000000e+00> : vector<16xf32>
    %50 = vector.multi_reduction <add>, %49, %cst_24 [1] : vector<16x64xf32> to vector<16xf32>
    %51 = vector.shape_cast %50 : vector<16xf32> to vector<16x1xf32>
    %52 = arith.truncf %47 : vector<16x64xf32> to vector<16x64xbf16>
    %cst_25 = arith.constant dense<0.000000e+00> : vector<16x16xf32>
    %53 = tpu.matmul %52, %52, %cst_25 {dimension_numbers = #tpu.dot_dimension_numbers<[1], [1], [0], [0], [0, 0, 1, 0], [], []>} : vector<16x64xbf16>, vector<16x64xbf16>, vector<16x16xf32> -> vector<16x16xf32>
    %cst_26 = arith.constant 2.000000e+00 : f32
    %54 = vector.broadcast %cst_26 : f32 to vector<16x16xf32>
    %55 = arith.mulf %54, %53 : vector<16x16xf32>
    %56 = vector.broadcast %51 : vector<16x1xf32> to vector<16x16xf32>
    %57 = arith.subf %55, %56 : vector<16x16xf32>
    %58 = tpu.transpose %51, [1, 0] : vector<16x1xf32> -> vector<1x16xf32>
    %59 = vector.broadcast %58 : vector<1x16xf32> to vector<16x16xf32>
    %60 = arith.subf %57, %59 : vector<16x16xf32>
    %cst_27 = arith.constant 0.176776692 : f32
    %61 = vector.broadcast %cst_27 : f32 to vector<16x16xf32>
    %62 = arith.mulf %60, %61 : vector<16x16xf32>
    %cst_28 = arith.constant -1.000000e+32 : f32
    %63 = vector.broadcast %cst_28 : f32 to vector<16x16xf32>
    %64 = arith.select %24, %62, %63 : vector<16x16xi1>, vector<16x16xf32>
    %cst_29 = arith.constant dense<0xFF800000> : vector<16xf32>
    %65 = vector.multi_reduction <maximumf>, %64, %cst_29 [1] : vector<16x16xf32> to vector<16xf32>
    %66 = vector.shape_cast %65 : vector<16xf32> to vector<16x1xf32>
    %67 = vector.broadcast %66 : vector<16x1xf32> to vector<16x16xf32>
    %68 = arith.subf %64, %67 : vector<16x16xf32>
    %69 = math.exp %68 : vector<16x16xf32>
    %cst_30 = arith.constant dense<0.000000e+00> : vector<16xf32>
    %70 = vector.multi_reduction <add>, %69, %cst_30 [1] : vector<16x16xf32> to vector<16xf32>
    %71 = vector.shape_cast %70 : vector<16xf32> to vector<16x1xf32>
    %72 = tpu.reciprocal %71 {approx = true} : vector<16x1xf32> -> vector<16x1xf32>
    %73 = vector.broadcast %72 : vector<16x1xf32> to vector<16x16xf32>
    %74 = arith.mulf %69, %73 : vector<16x16xf32>
    %cst_31 = arith.constant 0.000000e+00 : f32
    %75 = vector.broadcast %cst_31 : f32 to vector<16x16xf32>
    %76 = arith.select %26, %75, %74 : vector<16x16xi1>, vector<16x16xf32>
    %77 = arith.truncf %76 : vector<16x16xf32> to vector<16x16xbf16>
    %cst_32 = arith.constant dense<0.000000e+00> : vector<16x16xf32>
    %78 = tpu.matmul %77, %33, %cst_32 {dimension_numbers = #tpu.dot_dimension_numbers<[1], [0], [0], [1], [0, 0, 1, 1], [], []>} : vector<16x16xbf16>, vector<16x16xbf16>, vector<16x16xf32> -> vector<16x16xf32>
    %cst_33 = arith.constant 0.000000e+00 : f32
    %79 = vector.broadcast %cst_33 : f32 to vector<16x16xf32>
    %80 = arith.maximumf %78, %79 : vector<16x16xf32>
    %81 = arith.mulf %80, %29 : vector<16x16xf32>
    %82 = arith.index_cast %arg1 : i32 to index
    %c0_34 = arith.constant 0 : index
    %83 = memref.load %arg4[%82, %c0_34] : memref<2x2xf32, #tpu.memory_space<smem>>
    %84 = vector.broadcast %83 : f32 to vector<16x16xf32>
    %85 = arith.mulf %81, %84 : vector<16x16xf32>
    %86 = math.sqrt %85 : vector<16x16xf32>
    %cst_35 = arith.constant 0.000000e+00 : f32
    %87 = vector.broadcast %cst_35 : f32 to vector<16x16xf32>
    %88 = arith.subf %87, %86 : vector<16x16xf32>
    %89 = math.exp %88 : vector<16x16xf32>
    %cst_36 = arith.constant 9.99999974E-6 : f32
    %cst_37 = arith.constant 1.000000e+05 : f32
    %90 = vector.broadcast %cst_36 : f32 to vector<16x16xf32>
    %91 = arith.maximumf %90, %89 : vector<16x16xf32>
    %92 = vector.broadcast %cst_37 : f32 to vector<16x16xf32>
    %93 = arith.minimumf %92, %91 : vector<16x16xf32>
    %94 = arith.mulf %62, %93 : vector<16x16xf32>
    %cst_38 = arith.constant -1.000000e+32 : f32
    %95 = vector.broadcast %cst_38 : f32 to vector<16x16xf32>
    %96 = arith.select %24, %94, %95 : vector<16x16xi1>, vector<16x16xf32>
    %cst_39 = arith.constant dense<0xFF800000> : vector<16xf32>
    %97 = vector.multi_reduction <maximumf>, %96, %cst_39 [1] : vector<16x16xf32> to vector<16xf32>
    %98 = vector.shape_cast %97 : vector<16xf32> to vector<16x1xf32>
    %99 = vector.broadcast %98 : vector<16x1xf32> to vector<16x16xf32>
    %100 = arith.subf %96, %99 : vector<16x16xf32>
    %101 = math.exp %100 : vector<16x16xf32>
    %cst_40 = arith.constant dense<0.000000e+00> : vector<16xf32>
    %102 = vector.multi_reduction <add>, %101, %cst_40 [1] : vector<16x16xf32> to vector<16xf32>
    %103 = vector.shape_cast %102 : vector<16xf32> to vector<16x1xf32>
    %104 = tpu.reciprocal %103 {approx = true} : vector<16x1xf32> -> vector<16x1xf32>
    %105 = vector.broadcast %104 : vector<16x1xf32> to vector<16x16xf32>
    %106 = arith.mulf %101, %105 : vector<16x16xf32>
    %cst_41 = arith.constant 0.000000e+00 : f32
    %107 = vector.broadcast %cst_41 : f32 to vector<16x16xf32>
    %108 = arith.select %26, %107, %106 : vector<16x16xi1>, vector<16x16xf32>
    %109 = vector.extract_strided_slice %21 {offsets = [0, 0], sizes = [16, 64], strides = [1, 1]} : vector<16x128xf32> to vector<16x64xf32>
    %110 = arith.truncf %109 : vector<16x64xf32> to vector<16x64xbf16>
    %111 = arith.truncf %108 : vector<16x16xf32> to vector<16x16xbf16>
    %cst_42 = arith.constant dense<0.000000e+00> : vector<16x64xf32>
    %112 = tpu.matmul %111, %110, %cst_42 {dimension_numbers = #tpu.dot_dimension_numbers<[1], [0], [0], [1], [0, 0, 1, 1], [], []>} : vector<16x16xbf16>, vector<16x64xbf16>, vector<16x64xf32> -> vector<16x64xf32>
    %113 = arith.mulf %108, %108 : vector<16x16xf32>
    %114 = arith.truncf %113 : vector<16x16xf32> to vector<16x16xbf16>
    %cst_43 = arith.constant dense<0.000000e+00> : vector<16x64xf32>
    %115 = tpu.matmul %114, %110, %cst_43 {dimension_numbers = #tpu.dot_dimension_numbers<[1], [0], [0], [1], [0, 0, 1, 1], [], []>} : vector<16x16xbf16>, vector<16x64xbf16>, vector<16x64xf32> -> vector<16x64xf32>
    %116 = arith.select %36, %112, %115 : vector<16x64xi1>, vector<16x64xf32>
    %117 = arith.truncf %116 : vector<16x64xf32> to vector<16x64xbf16>
    %118 = vector.extract_strided_slice %41 {offsets = [0, 0], sizes = [64, 128], strides = [1, 1]} : vector<128x128xbf16> to vector<64x128xbf16>
    %cst_44 = arith.constant dense<0.000000e+00> : vector<16x128xf32>
    %119 = tpu.matmul %117, %118, %cst_44 {dimension_numbers = #tpu.dot_dimension_numbers<[1], [0], [0], [1], [0, 0, 1, 1], [], []>} : vector<16x64xbf16>, vector<64x128xbf16>, vector<16x128xf32> -> vector<16x128xf32>
    %120 = arith.addf %42, %119 : vector<16x128xf32>
    %121 = vector.extract_strided_slice %13 {offsets = [0, 64], sizes = [16, 64], strides = [1, 1]} : vector<16x128xf32> to vector<16x64xf32>
    %cst_45 = arith.constant 1.000000e-24 : f32
    %122 = vector.broadcast %cst_45 : f32 to vector<16x64xf32>
    %123 = arith.maximumf %121, %122 : vector<16x64xf32>
    %124 = math.sqrt %123 : vector<16x64xf32>
    %125 = arith.select %36, %121, %124 : vector<16x64xi1>, vector<16x64xf32>
    %126 = arith.mulf %121, %121 : vector<16x64xf32>
    %127 = arith.select %36, %126, %121 : vector<16x64xi1>, vector<16x64xf32>
    %cst_46 = arith.constant dense<0.000000e+00> : vector<16xf32>
    %128 = vector.multi_reduction <add>, %127, %cst_46 [1] : vector<16x64xf32> to vector<16xf32>
    %129 = vector.shape_cast %128 : vector<16xf32> to vector<16x1xf32>
    %130 = arith.truncf %125 : vector<16x64xf32> to vector<16x64xbf16>
    %cst_47 = arith.constant dense<0.000000e+00> : vector<16x16xf32>
    %131 = tpu.matmul %130, %130, %cst_47 {dimension_numbers = #tpu.dot_dimension_numbers<[1], [1], [0], [0], [0, 0, 1, 0], [], []>} : vector<16x64xbf16>, vector<16x64xbf16>, vector<16x16xf32> -> vector<16x16xf32>
    %cst_48 = arith.constant 2.000000e+00 : f32
    %132 = vector.broadcast %cst_48 : f32 to vector<16x16xf32>
    %133 = arith.mulf %132, %131 : vector<16x16xf32>
    %134 = vector.broadcast %129 : vector<16x1xf32> to vector<16x16xf32>
    %135 = arith.subf %133, %134 : vector<16x16xf32>
    %136 = tpu.transpose %129, [1, 0] : vector<16x1xf32> -> vector<1x16xf32>
    %137 = vector.broadcast %136 : vector<1x16xf32> to vector<16x16xf32>
    %138 = arith.subf %135, %137 : vector<16x16xf32>
    %cst_49 = arith.constant 0.176776692 : f32
    %139 = vector.broadcast %cst_49 : f32 to vector<16x16xf32>
    %140 = arith.mulf %138, %139 : vector<16x16xf32>
    %cst_50 = arith.constant -1.000000e+32 : f32
    %141 = vector.broadcast %cst_50 : f32 to vector<16x16xf32>
    %142 = arith.select %24, %140, %141 : vector<16x16xi1>, vector<16x16xf32>
    %cst_51 = arith.constant dense<0xFF800000> : vector<16xf32>
    %143 = vector.multi_reduction <maximumf>, %142, %cst_51 [1] : vector<16x16xf32> to vector<16xf32>
    %144 = vector.shape_cast %143 : vector<16xf32> to vector<16x1xf32>
    %145 = vector.broadcast %144 : vector<16x1xf32> to vector<16x16xf32>
    %146 = arith.subf %142, %145 : vector<16x16xf32>
    %147 = math.exp %146 : vector<16x16xf32>
    %cst_52 = arith.constant dense<0.000000e+00> : vector<16xf32>
    %148 = vector.multi_reduction <add>, %147, %cst_52 [1] : vector<16x16xf32> to vector<16xf32>
    %149 = vector.shape_cast %148 : vector<16xf32> to vector<16x1xf32>
    %150 = tpu.reciprocal %149 {approx = true} : vector<16x1xf32> -> vector<16x1xf32>
    %151 = vector.broadcast %150 : vector<16x1xf32> to vector<16x16xf32>
    %152 = arith.mulf %147, %151 : vector<16x16xf32>
    %cst_53 = arith.constant 0.000000e+00 : f32
    %153 = vector.broadcast %cst_53 : f32 to vector<16x16xf32>
    %154 = arith.select %26, %153, %152 : vector<16x16xi1>, vector<16x16xf32>
    %155 = arith.truncf %154 : vector<16x16xf32> to vector<16x16xbf16>
    %cst_54 = arith.constant dense<0.000000e+00> : vector<16x16xf32>
    %156 = tpu.matmul %155, %33, %cst_54 {dimension_numbers = #tpu.dot_dimension_numbers<[1], [0], [0], [1], [0, 0, 1, 1], [], []>} : vector<16x16xbf16>, vector<16x16xbf16>, vector<16x16xf32> -> vector<16x16xf32>
    %cst_55 = arith.constant 0.000000e+00 : f32
    %157 = vector.broadcast %cst_55 : f32 to vector<16x16xf32>
    %158 = arith.maximumf %156, %157 : vector<16x16xf32>
    %159 = arith.mulf %158, %29 : vector<16x16xf32>
    %160 = arith.index_cast %arg1 : i32 to index
    %c1 = arith.constant 1 : index
    %161 = memref.load %arg4[%160, %c1] : memref<2x2xf32, #tpu.memory_space<smem>>
    %162 = vector.broadcast %161 : f32 to vector<16x16xf32>
    %163 = arith.mulf %159, %162 : vector<16x16xf32>
    %164 = math.sqrt %163 : vector<16x16xf32>
    %cst_56 = arith.constant 0.000000e+00 : f32
    %165 = vector.broadcast %cst_56 : f32 to vector<16x16xf32>
    %166 = arith.subf %165, %164 : vector<16x16xf32>
    %167 = math.exp %166 : vector<16x16xf32>
    %cst_57 = arith.constant 9.99999974E-6 : f32
    %cst_58 = arith.constant 1.000000e+05 : f32
    %168 = vector.broadcast %cst_57 : f32 to vector<16x16xf32>
    %169 = arith.maximumf %168, %167 : vector<16x16xf32>
    %170 = vector.broadcast %cst_58 : f32 to vector<16x16xf32>
    %171 = arith.minimumf %170, %169 : vector<16x16xf32>
    %172 = arith.mulf %140, %171 : vector<16x16xf32>
    %cst_59 = arith.constant -1.000000e+32 : f32
    %173 = vector.broadcast %cst_59 : f32 to vector<16x16xf32>
    %174 = arith.select %24, %172, %173 : vector<16x16xi1>, vector<16x16xf32>
    %cst_60 = arith.constant dense<0xFF800000> : vector<16xf32>
    %175 = vector.multi_reduction <maximumf>, %174, %cst_60 [1] : vector<16x16xf32> to vector<16xf32>
    %176 = vector.shape_cast %175 : vector<16xf32> to vector<16x1xf32>
    %177 = vector.broadcast %176 : vector<16x1xf32> to vector<16x16xf32>
    %178 = arith.subf %174, %177 : vector<16x16xf32>
    %179 = math.exp %178 : vector<16x16xf32>
    %cst_61 = arith.constant dense<0.000000e+00> : vector<16xf32>
    %180 = vector.multi_reduction <add>, %179, %cst_61 [1] : vector<16x16xf32> to vector<16xf32>
    %181 = vector.shape_cast %180 : vector<16xf32> to vector<16x1xf32>
    %182 = tpu.reciprocal %181 {approx = true} : vector<16x1xf32> -> vector<16x1xf32>
    %183 = vector.broadcast %182 : vector<16x1xf32> to vector<16x16xf32>
    %184 = arith.mulf %179, %183 : vector<16x16xf32>
    %cst_62 = arith.constant 0.000000e+00 : f32
    %185 = vector.broadcast %cst_62 : f32 to vector<16x16xf32>
    %186 = arith.select %26, %185, %184 : vector<16x16xi1>, vector<16x16xf32>
    %187 = vector.extract_strided_slice %21 {offsets = [0, 64], sizes = [16, 64], strides = [1, 1]} : vector<16x128xf32> to vector<16x64xf32>
    %188 = arith.truncf %187 : vector<16x64xf32> to vector<16x64xbf16>
    %189 = arith.truncf %186 : vector<16x16xf32> to vector<16x16xbf16>
    %cst_63 = arith.constant dense<0.000000e+00> : vector<16x64xf32>
    %190 = tpu.matmul %189, %188, %cst_63 {dimension_numbers = #tpu.dot_dimension_numbers<[1], [0], [0], [1], [0, 0, 1, 1], [], []>} : vector<16x16xbf16>, vector<16x64xbf16>, vector<16x64xf32> -> vector<16x64xf32>
    %191 = arith.mulf %186, %186 : vector<16x16xf32>
    %192 = arith.truncf %191 : vector<16x16xf32> to vector<16x16xbf16>
    %cst_64 = arith.constant dense<0.000000e+00> : vector<16x64xf32>
    %193 = tpu.matmul %192, %188, %cst_64 {dimension_numbers = #tpu.dot_dimension_numbers<[1], [0], [0], [1], [0, 0, 1, 1], [], []>} : vector<16x16xbf16>, vector<16x64xbf16>, vector<16x64xf32> -> vector<16x64xf32>
    %194 = arith.select %36, %190, %193 : vector<16x64xi1>, vector<16x64xf32>
    %195 = arith.truncf %194 : vector<16x64xf32> to vector<16x64xbf16>
    %196 = vector.extract_strided_slice %41 {offsets = [64, 0], sizes = [64, 128], strides = [1, 1]} : vector<128x128xbf16> to vector<64x128xbf16>
    %cst_65 = arith.constant dense<0.000000e+00> : vector<16x128xf32>
    %197 = tpu.matmul %195, %196, %cst_65 {dimension_numbers = #tpu.dot_dimension_numbers<[1], [0], [0], [1], [0, 0, 1, 1], [], []>} : vector<16x64xbf16>, vector<64x128xbf16>, vector<16x128xf32> -> vector<16x128xf32>
    %198 = arith.addf %120, %197 : vector<16x128xf32>
    %c0_66 = arith.constant 0 : index
    %c0_67 = arith.constant 0 : index
    %c0_68 = arith.constant 0 : index
    %199 = vector.load %arg10[%c0_66, %c0_67, %c0_68] : memref<1x1x128xf32, #tpu.memory_space<vmem>>, vector<1x1x128xf32>
    %200 = vector.shape_cast %199 : vector<1x1x128xf32> to vector<1x128xf32>
    %201 = vector.broadcast %200 : vector<1x128xf32> to vector<16x128xf32>
    %202 = arith.addf %198, %201 : vector<16x128xf32>
    %203 = arith.addf %3, %202 : vector<16x128xf32>
    %cst_69 = arith.constant 0.000000e+00 : f32
    %204 = vector.broadcast %cst_69 : f32 to vector<16x128xf32>
    %205 = arith.minimumf %203, %204 : vector<16x128xf32>
    %206 = math.exp %205 : vector<16x128xf32>
    %cst_70 = arith.constant 0.000000e+00 : f32
    %207 = vector.broadcast %cst_70 : f32 to vector<16x128xf32>
    %208 = arith.maximumf %203, %207 : vector<16x128xf32>
    %209 = arith.addf %206, %208 : vector<16x128xf32>
    %210 = arith.select %39, %203, %209 : vector<16x128xi1>, vector<16x128xf32>
    %cst_71 = arith.constant 0.000000e+00 : f32
    %211 = vector.broadcast %cst_71 : f32 to vector<16x128xf32>
    %212 = arith.select %39, %210, %211 : vector<16x128xi1>, vector<16x128xf32>
    %213 = arith.subf %210, %212 : vector<16x128xf32>
    %cst_72 = arith.constant dense<0.000000e+00> : vector<16xf32>
    %214 = vector.multi_reduction <add>, %212, %cst_72 [1] : vector<16x128xf32> to vector<16xf32>
    %215 = vector.shape_cast %214 : vector<16xf32> to vector<16x1xf32>
    %cst_73 = arith.constant 1.562500e-02 : f32
    %216 = vector.broadcast %cst_73 : f32 to vector<16x1xf32>
    %217 = arith.mulf %215, %216 : vector<16x1xf32>
    %cst_74 = arith.constant dense<0.000000e+00> : vector<16xf32>
    %218 = vector.multi_reduction <add>, %213, %cst_74 [1] : vector<16x128xf32> to vector<16xf32>
    %219 = vector.shape_cast %218 : vector<16xf32> to vector<16x1xf32>
    %cst_75 = arith.constant 1.562500e-02 : f32
    %220 = vector.broadcast %cst_75 : f32 to vector<16x1xf32>
    %221 = arith.mulf %219, %220 : vector<16x1xf32>
    %222 = vector.shape_cast %217 : vector<16x1xf32> to vector<16x1xf32>
    %223 = vector.broadcast %222 : vector<16x1xf32> to vector<16x128xf32>
    %224 = vector.shape_cast %221 : vector<16x1xf32> to vector<16x1xf32>
    %225 = vector.broadcast %224 : vector<16x1xf32> to vector<16x128xf32>
    %226 = arith.select %39, %223, %225 : vector<16x128xi1>, vector<16x128xf32>
    %227 = arith.subf %210, %226 : vector<16x128xf32>
    %cst_76 = arith.constant 0.000000e+00 : f32
    %228 = vector.broadcast %cst_76 : f32 to vector<16x128xf32>
    %229 = arith.select %39, %227, %228 : vector<16x128xi1>, vector<16x128xf32>
    %230 = arith.subf %227, %229 : vector<16x128xf32>
    %231 = arith.mulf %229, %229 : vector<16x128xf32>
    %cst_77 = arith.constant dense<0.000000e+00> : vector<16xf32>
    %232 = vector.multi_reduction <add>, %231, %cst_77 [1] : vector<16x128xf32> to vector<16xf32>
    %233 = vector.shape_cast %232 : vector<16xf32> to vector<16x1xf32>
    %cst_78 = arith.constant 1.562500e-02 : f32
    %234 = vector.broadcast %cst_78 : f32 to vector<16x1xf32>
    %235 = arith.mulf %233, %234 : vector<16x1xf32>
    %236 = arith.mulf %230, %230 : vector<16x128xf32>
    %cst_79 = arith.constant dense<0.000000e+00> : vector<16xf32>
    %237 = vector.multi_reduction <add>, %236, %cst_79 [1] : vector<16x128xf32> to vector<16xf32>
    %238 = vector.shape_cast %237 : vector<16xf32> to vector<16x1xf32>
    %cst_80 = arith.constant 1.562500e-02 : f32
    %239 = vector.broadcast %cst_80 : f32 to vector<16x1xf32>
    %240 = arith.mulf %238, %239 : vector<16x1xf32>
    %241 = vector.shape_cast %235 : vector<16x1xf32> to vector<16x1xf32>
    %242 = vector.broadcast %241 : vector<16x1xf32> to vector<16x128xf32>
    %243 = vector.shape_cast %240 : vector<16x1xf32> to vector<16x1xf32>
    %244 = vector.broadcast %243 : vector<16x1xf32> to vector<16x128xf32>
    %245 = arith.select %39, %242, %244 : vector<16x128xi1>, vector<16x128xf32>
    %cst_81 = arith.constant 9.99999974E-6 : f32
    %246 = vector.broadcast %cst_81 : f32 to vector<16x128xf32>
    %247 = arith.addf %245, %246 : vector<16x128xf32>
    %248 = math.rsqrt %247 : vector<16x128xf32>
    %249 = arith.mulf %227, %248 : vector<16x128xf32>
    %250 = arith.truncf %249 : vector<16x128xf32> to vector<16x128xbf16>
    %c0_82 = arith.constant 0 : index
    %c0_83 = arith.constant 0 : index
    %c0_84 = arith.constant 0 : index
    %251 = vector.load %arg11[%c0_82, %c0_83, %c0_84] : memref<1x128x128xbf16, #tpu.memory_space<vmem>>, vector<1x128x128xbf16>
    %252 = vector.shape_cast %251 : vector<1x128x128xbf16> to vector<128x128xbf16>
    %cst_85 = arith.constant dense<0.000000e+00> : vector<16x128xf32>
    %253 = tpu.matmul %250, %252, %cst_85 {dimension_numbers = #tpu.dot_dimension_numbers<[1], [0], [0], [1], [0, 0, 1, 1], [], []>} : vector<16x128xbf16>, vector<128x128xbf16>, vector<16x128xf32> -> vector<16x128xf32>
    %c0_86 = arith.constant 0 : index
    %c0_87 = arith.constant 0 : index
    %c0_88 = arith.constant 0 : index
    %254 = vector.load %arg12[%c0_86, %c0_87, %c0_88] : memref<1x1x128xf32, #tpu.memory_space<vmem>>, vector<1x1x128xf32>
    %255 = vector.shape_cast %254 : vector<1x1x128xf32> to vector<1x128xf32>
    %256 = vector.broadcast %255 : vector<1x128xf32> to vector<16x128xf32>
    %257 = arith.addf %253, %256 : vector<16x128xf32>
    %cst_89 = arith.constant 0.000000e+00 : f32
    %258 = vector.broadcast %cst_89 : f32 to vector<16x128xf32>
    %259 = arith.maximumf %257, %258 : vector<16x128xf32>
    %260 = arith.truncf %259 : vector<16x128xf32> to vector<16x128xbf16>
    %c0_90 = arith.constant 0 : index
    %c0_91 = arith.constant 0 : index
    %c0_92 = arith.constant 0 : index
    %261 = vector.load %arg13[%c0_90, %c0_91, %c0_92] : memref<1x128x128xbf16, #tpu.memory_space<vmem>>, vector<1x128x128xbf16>
    %262 = vector.shape_cast %261 : vector<1x128x128xbf16> to vector<128x128xbf16>
    %cst_93 = arith.constant dense<0.000000e+00> : vector<16x128xf32>
    %263 = tpu.matmul %260, %262, %cst_93 {dimension_numbers = #tpu.dot_dimension_numbers<[1], [0], [0], [1], [0, 0, 1, 1], [], []>} : vector<16x128xbf16>, vector<128x128xbf16>, vector<16x128xf32> -> vector<16x128xf32>
    %c0_94 = arith.constant 0 : index
    %c0_95 = arith.constant 0 : index
    %c0_96 = arith.constant 0 : index
    %264 = vector.load %arg14[%c0_94, %c0_95, %c0_96] : memref<1x1x128xf32, #tpu.memory_space<vmem>>, vector<1x1x128xf32>
    %265 = vector.shape_cast %264 : vector<1x1x128xf32> to vector<1x128xf32>
    %266 = vector.broadcast %265 : vector<1x128xf32> to vector<16x128xf32>
    %267 = arith.addf %263, %266 : vector<16x128xf32>
    %cst_97 = arith.constant 0.000000e+00 : f32
    %268 = vector.broadcast %cst_97 : f32 to vector<16x128xf32>
    %269 = arith.minimumf %267, %268 : vector<16x128xf32>
    %270 = math.exp %269 : vector<16x128xf32>
    %cst_98 = arith.constant 0.000000e+00 : f32
    %271 = vector.broadcast %cst_98 : f32 to vector<16x128xf32>
    %272 = arith.maximumf %267, %271 : vector<16x128xf32>
    %273 = arith.addf %270, %272 : vector<16x128xf32>
    %274 = arith.select %39, %267, %273 : vector<16x128xi1>, vector<16x128xf32>
    %cst_99 = arith.constant 0.000000e+00 : f32
    %275 = vector.broadcast %cst_99 : f32 to vector<16x128xf32>
    %276 = arith.select %39, %274, %275 : vector<16x128xi1>, vector<16x128xf32>
    %277 = arith.subf %274, %276 : vector<16x128xf32>
    %cst_100 = arith.constant dense<0.000000e+00> : vector<16xf32>
    %278 = vector.multi_reduction <add>, %276, %cst_100 [1] : vector<16x128xf32> to vector<16xf32>
    %279 = vector.shape_cast %278 : vector<16xf32> to vector<16x1xf32>
    %cst_101 = arith.constant 1.562500e-02 : f32
    %280 = vector.broadcast %cst_101 : f32 to vector<16x1xf32>
    %281 = arith.mulf %279, %280 : vector<16x1xf32>
    %cst_102 = arith.constant dense<0.000000e+00> : vector<16xf32>
    %282 = vector.multi_reduction <add>, %277, %cst_102 [1] : vector<16x128xf32> to vector<16xf32>
    %283 = vector.shape_cast %282 : vector<16xf32> to vector<16x1xf32>
    %cst_103 = arith.constant 1.562500e-02 : f32
    %284 = vector.broadcast %cst_103 : f32 to vector<16x1xf32>
    %285 = arith.mulf %283, %284 : vector<16x1xf32>
    %286 = vector.shape_cast %281 : vector<16x1xf32> to vector<16x1xf32>
    %287 = vector.broadcast %286 : vector<16x1xf32> to vector<16x128xf32>
    %288 = vector.shape_cast %285 : vector<16x1xf32> to vector<16x1xf32>
    %289 = vector.broadcast %288 : vector<16x1xf32> to vector<16x128xf32>
    %290 = arith.select %39, %287, %289 : vector<16x128xi1>, vector<16x128xf32>
    %291 = arith.subf %274, %290 : vector<16x128xf32>
    %cst_104 = arith.constant 0.000000e+00 : f32
    %292 = vector.broadcast %cst_104 : f32 to vector<16x128xf32>
    %293 = arith.select %39, %291, %292 : vector<16x128xi1>, vector<16x128xf32>
    %294 = arith.subf %291, %293 : vector<16x128xf32>
    %295 = arith.mulf %293, %293 : vector<16x128xf32>
    %cst_105 = arith.constant dense<0.000000e+00> : vector<16xf32>
    %296 = vector.multi_reduction <add>, %295, %cst_105 [1] : vector<16x128xf32> to vector<16xf32>
    %297 = vector.shape_cast %296 : vector<16xf32> to vector<16x1xf32>
    %cst_106 = arith.constant 1.562500e-02 : f32
    %298 = vector.broadcast %cst_106 : f32 to vector<16x1xf32>
    %299 = arith.mulf %297, %298 : vector<16x1xf32>
    %300 = arith.mulf %294, %294 : vector<16x128xf32>
    %cst_107 = arith.constant dense<0.000000e+00> : vector<16xf32>
    %301 = vector.multi_reduction <add>, %300, %cst_107 [1] : vector<16x128xf32> to vector<16xf32>
    %302 = vector.shape_cast %301 : vector<16xf32> to vector<16x1xf32>
    %cst_108 = arith.constant 1.562500e-02 : f32
    %303 = vector.broadcast %cst_108 : f32 to vector<16x1xf32>
    %304 = arith.mulf %302, %303 : vector<16x1xf32>
    %305 = vector.shape_cast %299 : vector<16x1xf32> to vector<16x1xf32>
    %306 = vector.broadcast %305 : vector<16x1xf32> to vector<16x128xf32>
    %307 = vector.shape_cast %304 : vector<16x1xf32> to vector<16x1xf32>
    %308 = vector.broadcast %307 : vector<16x1xf32> to vector<16x128xf32>
    %309 = arith.select %39, %306, %308 : vector<16x128xi1>, vector<16x128xf32>
    %cst_109 = arith.constant 9.99999974E-6 : f32
    %310 = vector.broadcast %cst_109 : f32 to vector<16x128xf32>
    %311 = arith.addf %309, %310 : vector<16x128xf32>
    %312 = math.rsqrt %311 : vector<16x128xf32>
    %313 = arith.mulf %291, %312 : vector<16x128xf32>
    %c0_110 = arith.constant 0 : index
    %c0_111 = arith.constant 0 : index
    %314 = vector.load %arg16[%c0_110, %c0_111] : memref<16x128xf32, #tpu.memory_space<vmem>>, vector<16x128xf32>
    tpu.vector_store %arg16[%c0_110, %c0_111], %313 {strides = array<i32>} : memref<16x128xf32, #tpu.memory_space<vmem>>, vector<16x128xf32>,
    %c1_i32 = arith.constant 1 : i32
    %315 = arith.cmpi eq, %arg1, %c1_i32 : i32
    %316 = arith.extui %315 : i1 to i32
    %c0_i32_112 = arith.constant 0 : i32
    %317 = arith.cmpi ne, %316, %c0_i32_112 : i32
    scf.if %317 {
      %318 = vector.shape_cast %313 : vector<16x128xf32> to vector<1x16x128xf32>
      %c0_113 = arith.constant 0 : index
      %c0_114 = arith.constant 0 : index
      %c0_115 = arith.constant 0 : index
      %319 = vector.load %arg15[%c0_113, %c0_114, %c0_115] : memref<1x16x128xf32, #tpu.memory_space<vmem>>, vector<1x16x128xf32>
      tpu.vector_store %arg15[%c0_113, %c0_114, %c0_115], %318 {strides = array<i32>} : memref<1x16x128xf32, #tpu.memory_space<vmem>>, vector<1x16x128xf32>,
    } else {
    }
    return
  }
  func.func @transform_0(%arg0: i32, %arg1: i32) -> (i32, i32, i32) {
    %c0_i32 = arith.constant 0 : i32
    %c0_i32_0 = arith.constant 0 : i32
    %c0_i32_1 = arith.constant 0 : i32
    return %arg0, %c0_i32, %c0_i32_0 : i32, i32, i32
  }
  func.func @transform_1(%arg0: i32, %arg1: i32) -> (i32, i32, i32) {
    %c0_i32 = arith.constant 0 : i32
    %c0_i32_0 = arith.constant 0 : i32
    %c0_i32_1 = arith.constant 0 : i32
    return %arg0, %c0_i32, %c0_i32_0 : i32, i32, i32
  }
  func.func @transform_2(%arg0: i32, %arg1: i32) -> (i32, i32) {
    %c0_i32 = arith.constant 0 : i32
    %c0_i32_0 = arith.constant 0 : i32
    %c0_i32_1 = arith.constant 0 : i32
    return %c0_i32, %c0_i32_0 : i32, i32
  }
  func.func @transform_3(%arg0: i32, %arg1: i32) -> (i32, i32, i32) {
    %c0_i32 = arith.constant 0 : i32
    %c0_i32_0 = arith.constant 0 : i32
    %c0_i32_1 = arith.constant 0 : i32
    return %arg1, %c0_i32, %c0_i32_0 : i32, i32, i32
  }
  func.func @transform_4(%arg0: i32, %arg1: i32) -> (i32, i32, i32) {
    %c0_i32 = arith.constant 0 : i32
    %c0_i32_0 = arith.constant 0 : i32
    %c0_i32_1 = arith.constant 0 : i32
    return %arg1, %c0_i32, %c0_i32_0 : i32, i32, i32
  }
  func.func @transform_5(%arg0: i32, %arg1: i32) -> (i32, i32, i32) {
    %c0_i32 = arith.constant 0 : i32
    %c0_i32_0 = arith.constant 0 : i32
    %c0_i32_1 = arith.constant 0 : i32
    return %arg1, %c0_i32, %c0_i32_0 : i32, i32, i32
  }
  func.func @transform_6(%arg0: i32, %arg1: i32) -> (i32, i32, i32) {
    %c0_i32 = arith.constant 0 : i32
    %c0_i32_0 = arith.constant 0 : i32
    %c0_i32_1 = arith.constant 0 : i32
    return %arg1, %c0_i32, %c0_i32_0 : i32, i32, i32
  }
  func.func @transform_7(%arg0: i32, %arg1: i32) -> (i32, i32, i32) {
    %c0_i32 = arith.constant 0 : i32
    %c0_i32_0 = arith.constant 0 : i32
    %c0_i32_1 = arith.constant 0 : i32
    return %arg1, %c0_i32, %c0_i32_0 : i32, i32, i32
  }
  func.func @transform_8(%arg0: i32, %arg1: i32) -> (i32, i32, i32) {
    %c0_i32 = arith.constant 0 : i32
    %c0_i32_0 = arith.constant 0 : i32
    %c0_i32_1 = arith.constant 0 : i32
    return %arg1, %c0_i32, %c0_i32_0 : i32, i32, i32
  }
  func.func @transform_9(%arg0: i32, %arg1: i32) -> (i32, i32, i32) {
    %c0_i32 = arith.constant 0 : i32
    %c0_i32_0 = arith.constant 0 : i32
    %c0_i32_1 = arith.constant 0 : i32
    return %arg1, %c0_i32, %c0_i32_0 : i32, i32, i32
  }
  func.func @transform_10(%arg0: i32, %arg1: i32) -> (i32, i32, i32) {
    %c0_i32 = arith.constant 0 : i32
    %c0_i32_0 = arith.constant 0 : i32
    %c0_i32_1 = arith.constant 0 : i32
    return %arg1, %c0_i32, %c0_i32_0 : i32, i32, i32
  }
  func.func @transform_11(%arg0: i32, %arg1: i32) -> (i32, i32, i32) {
    %c0_i32 = arith.constant 0 : i32
    %c0_i32_0 = arith.constant 0 : i32
    %c0_i32_1 = arith.constant 0 : i32
    return %arg1, %c0_i32, %c0_i32_0 : i32, i32, i32
  }
  func.func @transform_12(%arg0: i32, %arg1: i32) -> (i32, i32, i32) {
    %c0_i32 = arith.constant 0 : i32
    %c0_i32_0 = arith.constant 0 : i32
    %c0_i32_1 = arith.constant 0 : i32
    return %arg1, %c0_i32, %c0_i32_0 : i32, i32, i32
  }
  func.func @transform_13(%arg0: i32, %arg1: i32) -> (i32, i32, i32) {
    %c0_i32 = arith.constant 0 : i32
    %c0_i32_0 = arith.constant 0 : i32
    %c0_i32_1 = arith.constant 0 : i32
    return %arg0, %c0_i32, %c0_i32_0 : i32, i32, i32
  }
}

</mosaic_0001>

<llo_original>
// kernel: architecture_forward.1
$region0: #{architecture_forward.1}
  #allocation0 [shape = 'u32[]', space=smem, size = 0x4, offset = 0x4, fixed_abs, tag = 'smem constant byte address 0x4 - core index']
  #allocation1 [shape = 'u32[72,128]{1,0:T(1,128)}', space=vmem, size = 0x9000, scoped, tag = 'internal scratch']
  #allocation2 [shape = 'f32[16,128]{1,0:T(8,128)}', space=vmem, size = 0x2000, scoped, tag = 'scratch operand']
  %s0 = inlined_call_operand.vmem [shape: f32[2,16,128], index: 0, kind: input, shape index: {}]
  %s1 = inlined_call_operand.vmem [shape: f32[2,16,128], index: 1, kind: input, shape index: {}]
  %s2 = inlined_call_operand.vmem [shape: f32[2,2], index: 2, kind: input, shape index: {}]
  %s3 = inlined_call_operand.vmem [shape: bf16[2,128,128], index: 3, kind: input, shape index: {}]
  %s4 = inlined_call_operand.vmem [shape: f32[2,1,128], index: 4, kind: input, shape index: {}]
  %s5 = inlined_call_operand.vmem [shape: bf16[2,128,128], index: 5, kind: input, shape index: {}]
  %s6 = inlined_call_operand.vmem [shape: f32[2,1,128], index: 6, kind: input, shape index: {}]
  %s7 = inlined_call_operand.vmem [shape: bf16[2,128,128], index: 7, kind: input, shape index: {}]
  %s8 = inlined_call_operand.vmem [shape: f32[2,1,128], index: 8, kind: input, shape index: {}]
  %s9 = inlined_call_operand.hbm [shape: bf16[2,128,128], index: 9, kind: input, shape index: {}]
  %s10 = inlined_call_operand.vmem [shape: f32[2,1,128], index: 10, kind: input, shape index: {}]
  %s11 = inlined_call_operand.hbm [shape: bf16[2,128,128], index: 11, kind: input, shape index: {}]
  %s12 = inlined_call_operand.vmem [shape: f32[2,1,128], index: 12, kind: input, shape index: {}]
  %s13 = inlined_call_operand.vmem [shape: f32[2,16,128], index: 13, kind: output, shape index: {}]
  %s14 = sld [smem:[#allocation0]]
  $region105: #{architecture_forward.1} parent=0
    _
  %s16 = ssub.s32 1, %s14
  %s17 = scalar_select 0, %s16, %s14
  $region1: #{architecture_forward.1} parent=0
    #allocation3 [shape = 'u8[1024]{0}', space=smem, size = 0x400, scoped, tag = 'input window, operand 2, single buffered']
    #allocation4 [shape = 's32[2]{0}', space=sflag, size = 0x8, scoped, tag = 'scoped memory for architecture_forward.1']
    #allocation5 [shape = 's32[2]{0}', space=sflag, size = 0x8, scoped, tag = 'scoped memory for architecture_forward.1']
    #allocation6 [shape = 'u8[65536]{0}', space=vmem, size = 0x10000, scoped, tag = 'input window, operand 9']
    #allocation7 [shape = 'u8[65536]{0}', space=vmem, size = 0x10000, scoped, tag = 'input window, operand 11']
    #allocation8 [shape = 's32[2]{0}', space=sflag, size = 0x8, scoped, tag = 'scoped memory for architecture_forward.1']
    %18 = vsyncpa [#allocation5], 0
    %19 = vsyncpa [#allocation4], 0
    %s20 = scalar_lea.sflag [#allocation4], 1
    %21 = vsyncpa %s20, 0
    %22 = vsyncpa [#allocation8], 0
    %s23 = scalar_lea.sflag [#allocation8], 1
    %24 = vsyncpa %s23, 0
    loop: start=0, step=1, limit=6
    $region2: #{architecture_forward.1} parent=1 // loop_pre_header
      _
    $region3: #{architecture_forward.1} parent=1 // loop_header
      %s26 = sphi 0, %s30
      %p27 = scmp.ge.s32.totalorder %s26, 6
      %s33 = sphi 0, %s45
      %s34 = sphi 0, %s41
      %s35 = sphi 0, %s33
      %s36 = sphi 0, %s34
      %s37 = sphi 0, %s35
      %s38 = sphi 0, %s36
      %s48 = sphi 0, %s50
      %s51 = sphi 0, %s48
      %s52 = sphi 0, %s51
      %s68 = sphi 0, %s52
      %s74 = sphi 0, %s76
      %s77 = sphi 0, %s74
      %s78 = sphi 0, %s77
      %s94 = sphi 0, %s78
      %s98 = sphi 0, %s98
      %s100 = sphi 0, %s98
      %s101 = sphi 0, %s100
      %s115 = sphi 0, %s101
      %s121 = sphi 0, %s123
      %s124 = sphi 0, %s121
      %s125 = sphi 0, %s124
      %s141 = sphi 0, %s125
      %s147 = sphi 0, %s149
      %s150 = sphi 0, %s147
      %s151 = sphi 0, %s150
      %s167 = sphi 0, %s151
      %s173 = sphi 0, %s175
      %s176 = sphi 0, %s173
      %s177 = sphi 0, %s176
      %s193 = sphi 0, %s177
      %s199 = sphi 0, %s201
      %s202 = sphi 0, %s199
      %s203 = sphi 0, %s202
      %s219 = sphi 0, %s203
      %s225 = sphi 0, %s227
      %s228 = sphi 0, %s225
      %s229 = sphi 0, %s228
      %s245 = sphi 0, %s229
      %s251 = sphi 0, %s253
      %s254 = sphi 0, %s251
      %s255 = sphi 0, %s254
      %s271 = sphi 0, %s255
      %s277 = sphi 0, %s279
      %s280 = sphi 0, %s277
      %s281 = sphi 0, %s280
      %s297 = sphi 0, %s281
      %s303 = sphi 0, %s305
      %s306 = sphi 0, %s303
      %s307 = sphi 0, %s306
      %s323 = sphi 0, %s307
      %s329 = sphi 0, %s331
      %s332 = sphi 0, %s329
      %s333 = sphi 0, %s332
      %s349 = sphi 0, %s333
      %s355 = sphi 0, %s357
      %s358 = sphi 0, %s355
      %s359 = sphi 0, %s358
      %s375 = sphi 0, %s359
      %s381 = sphi 0, %s383
      %s384 = sphi 0, %s381
      %s385 = sphi 0, %s384
      %s401 = sphi 0, %s385
    $region4: #{architecture_forward.1} parent=1 // loop_header_branch
      %29 = sbr.rel (%p27) target = $region8
    $region5: #{architecture_forward.1} parent=1 // loop_body
      %s31 = ssub.s32 %s26, 1
      %s32 = ssub.s32 %s26, 2
      %s39 = sadd.s32 1, %s34
      %p40 = scmp.ge.s32.totalorder %s39, 2
      %s41 = scalar_select %p40, 0, %s39
      %s42 = sadd.s32 1, %s33
      %s43 = scalar_select %p40, %s42, %s33
      %p44 = scmp.ge.s32.totalorder %s43, 2
      %s45 = scalar_select %p44, 0, %s43
      %s46 = ssub.s32 %s33, %s45
      %p47 = scmp.eq.s32.totalorder %s46, 0
      %s49 = sadd.s32 %s48, 1
      %s50 = scalar_select %p47, %s48, %s49
      %p53 = pneg %p47
      %p54 = scmp.eq.s32.totalorder %s26, 3
      %p55 = por %p53, %p54
      %p56 = scmp.ne.s32.totalorder %s48, %s51
      %p57 = scmp.eq.s32.totalorder %s26, 0
      %p58 = por %p56, %p57
      %p59 = scmp.ne.s32.totalorder %s48, %s51
      %p60 = scmp.eq.s32.totalorder %s31, 3
      %p61 = por %p59, %p60
      %p62 = scmp.ne.s32.totalorder %s51, %s52
      %p63 = scmp.eq.s32.totalorder %s31, 0
      %p64 = por %p62, %p63
      %p65 = scmp.ne.s32.totalorder %s51, %s52
      %p66 = scmp.eq.s32.totalorder %s32, 3
      %p67 = por %p65, %p66
      %p69 = scmp.ne.s32.totalorder %s52, %s68
      %p70 = scmp.eq.s32.totalorder %s32, 0
      %p71 = por %p69, %p70
      %s72 = ssub.s32 %s33, %s45
      %p73 = scmp.eq.s32.totalorder %s72, 0
      %s75 = sadd.s32 %s74, 1
      %s76 = scalar_select %p73, %s74, %s75
      %p79 = pneg %p73
      %p80 = scmp.eq.s32.totalorder %s26, 3
      %p81 = por %p79, %p80
      %p82 = scmp.ne.s32.totalorder %s74, %s77
      %p83 = scmp.eq.s32.totalorder %s26, 0
      %p84 = por %p82, %p83
      %p85 = scmp.ne.s32.totalorder %s74, %s77
      %p86 = scmp.eq.s32.totalorder %s31, 3
      %p87 = por %p85, %p86
      %p88 = scmp.ne.s32.totalorder %s77, %s78
      %p89 = scmp.eq.s32.totalorder %s31, 0
      %p90 = por %p88, %p89
      %p91 = scmp.ne.s32.totalorder %s77, %s78
      %p92 = scmp.eq.s32.totalorder %s32, 3
      %p93 = por %p91, %p92
      %p95 = scmp.ne.s32.totalorder %s78, %s94
      %p96 = scmp.eq.s32.totalorder %s32, 0
      %p97 = por %p95, %p96
      %s99 = sadd.s32 %s98, 1
      %p102 = scmp.eq.s32.totalorder %s26, 3
      %p103 = scmp.ne.s32.totalorder %s98, %s100
      %p104 = scmp.eq.s32.totalorder %s26, 0
      %p105 = por %p103, %p104
      %p106 = scmp.ne.s32.totalorder %s98, %s100
      %p107 = scmp.eq.s32.totalorder %s31, 3
      %p108 = por %p106, %p107
      %p109 = scmp.ne.s32.totalorder %s100, %s101
      %p110 = scmp.eq.s32.totalorder %s31, 0
      %p111 = por %p109, %p110
      %p112 = scmp.ne.s32.totalorder %s100, %s101
      %p113 = scmp.eq.s32.totalorder %s32, 3
      %p114 = por %p112, %p113
      %p116 = scmp.ne.s32.totalorder %s101, %s115
      %p117 = scmp.eq.s32.totalorder %s32, 0
      %p118 = por %p116, %p117
      %s119 = ssub.s32 %s34, %s41
      %p120 = scmp.eq.s32.totalorder %s119, 0
      %s122 = sadd.s32 %s121, 1
      %s123 = scalar_select %p120, %s121, %s122
      %p126 = pneg %p120
      %p127 = scmp.eq.s32.totalorder %s26, 3
      %p128 = por %p126, %p127
      %p129 = scmp.ne.s32.totalorder %s121, %s124
      %p130 = scmp.eq.s32.totalorder %s26, 0
      %p131 = por %p129, %p130
      %p132 = scmp.ne.s32.totalorder %s121, %s124
      %p133 = scmp.eq.s32.totalorder %s31, 3
      %p134 = por %p132, %p133
      %p135 = scmp.ne.s32.totalorder %s124, %s125
      %p136 = scmp.eq.s32.totalorder %s31, 0
      %p137 = por %p135, %p136
      %p138 = scmp.ne.s32.totalorder %s124, %s125
      %p139 = scmp.eq.s32.totalorder %s32, 3
      %p140 = por %p138, %p139
      %p142 = scmp.ne.s32.totalorder %s125, %s141
      %p143 = scmp.eq.s32.totalorder %s32, 0
      %p144 = por %p142, %p143
      %s145 = ssub.s32 %s34, %s41
      %p146 = scmp.eq.s32.totalorder %s145, 0
      %s148 = sadd.s32 %s147, 1
      %s149 = scalar_select %p146, %s147, %s148
      %p152 = pneg %p146
      %p153 = scmp.eq.s32.totalorder %s26, 3
      %p154 = por %p152, %p153
      %p155 = scmp.ne.s32.totalorder %s147, %s150
      %p156 = scmp.eq.s32.totalorder %s26, 0
      %p157 = por %p155, %p156
      %p158 = scmp.ne.s32.totalorder %s147, %s150
      %p159 = scmp.eq.s32.totalorder %s31, 3
      %p160 = por %p158, %p159
      %p161 = scmp.ne.s32.totalorder %s150, %s151
      %p162 = scmp.eq.s32.totalorder %s31, 0
      %p163 = por %p161, %p162
      %p164 = scmp.ne.s32.totalorder %s150, %s151
      %p165 = scmp.eq.s32.totalorder %s32, 3
      %p166 = por %p164, %p165
      %p168 = scmp.ne.s32.totalorder %s151, %s167
      %p169 = scmp.eq.s32.totalorder %s32, 0
      %p170 = por %p168, %p169
      %s171 = ssub.s32 %s34, %s41
      %p172 = scmp.eq.s32.totalorder %s171, 0
      %s174 = sadd.s32 %s173, 1
      %s175 = scalar_select %p172, %s173, %s174
      %p178 = pneg %p172
      %p179 = scmp.eq.s32.totalorder %s26, 3
      %p180 = por %p178, %p179
      %p181 = scmp.ne.s32.totalorder %s173, %s176
      %p182 = scmp.eq.s32.totalorder %s26, 0
      %p183 = por %p181, %p182
      %p184 = scmp.ne.s32.totalorder %s173, %s176
      %p185 = scmp.eq.s32.totalorder %s31, 3
      %p186 = por %p184, %p185
      %p187 = scmp.ne.s32.totalorder %s176, %s177
      %p188 = scmp.eq.s32.totalorder %s31, 0
      %p189 = por %p187, %p188
      %p190 = scmp.ne.s32.totalorder %s176, %s177
      %p191 = scmp.eq.s32.totalorder %s32, 3
      %p192 = por %p190, %p191
      %p194 = scmp.ne.s32.totalorder %s177, %s193
      %p195 = scmp.eq.s32.totalorder %s32, 0
      %p196 = por %p194, %p195
      %s197 = ssub.s32 %s34, %s41
      %p198 = scmp.eq.s32.totalorder %s197, 0
      %s200 = sadd.s32 %s199, 1
      %s201 = scalar_select %p198, %s199, %s200
      %p204 = pneg %p198
      %p205 = scmp.eq.s32.totalorder %s26, 3
      %p206 = por %p204, %p205
      %p207 = scmp.ne.s32.totalorder %s199, %s202
      %p208 = scmp.eq.s32.totalorder %s26, 0
      %p209 = por %p207, %p208
      %p210 = scmp.ne.s32.totalorder %s199, %s202
      %p211 = scmp.eq.s32.totalorder %s31, 3
      %p212 = por %p210, %p211
      %p213 = scmp.ne.s32.totalorder %s202, %s203
      %p214 = scmp.eq.s32.totalorder %s31, 0
      %p215 = por %p213, %p214
      %p216 = scmp.ne.s32.totalorder %s202, %s203
      %p217 = scmp.eq.s32.totalorder %s32, 3
      %p218 = por %p216, %p217
      %p220 = scmp.ne.s32.totalorder %s203, %s219
      %p221 = scmp.eq.s32.totalorder %s32, 0
      %p222 = por %p220, %p221
      %s223 = ssub.s32 %s34, %s41
      %p224 = scmp.eq.s32.totalorder %s223, 0
      %s226 = sadd.s32 %s225, 1
      %s227 = scalar_select %p224, %s225, %s226
      %p230 = pneg %p224
      %p231 = scmp.eq.s32.totalorder %s26, 3
      %p232 = por %p230, %p231
      %p233 = scmp.ne.s32.totalorder %s225, %s228
      %p234 = scmp.eq.s32.totalorder %s26, 0
      %p235 = por %p233, %p234
      %p236 = scmp.ne.s32.totalorder %s225, %s228
      %p237 = scmp.eq.s32.totalorder %s31, 3
      %p238 = por %p236, %p237
      %p239 = scmp.ne.s32.totalorder %s228, %s229
      %p240 = scmp.eq.s32.totalorder %s31, 0
      %p241 = por %p239, %p240
      %p242 = scmp.ne.s32.totalorder %s228, %s229
      %p243 = scmp.eq.s32.totalorder %s32, 3
      %p244 = por %p242, %p243
      %p246 = scmp.ne.s32.totalorder %s229, %s245
      %p247 = scmp.eq.s32.totalorder %s32, 0
      %p248 = por %p246, %p247
      %s249 = ssub.s32 %s34, %s41
      %p250 = scmp.eq.s32.totalorder %s249, 0
      %s252 = sadd.s32 %s251, 1
      %s253 = scalar_select %p250, %s251, %s252
      %p256 = pneg %p250
      %p257 = scmp.eq.s32.totalorder %s26, 3
      %p258 = por %p256, %p257
      %p259 = scmp.ne.s32.totalorder %s251, %s254
      %p260 = scmp.eq.s32.totalorder %s26, 0
      %p261 = por %p259, %p260
      %p262 = scmp.ne.s32.totalorder %s251, %s254
      %p263 = scmp.eq.s32.totalorder %s31, 3
      %p264 = por %p262, %p263
      %p265 = scmp.ne.s32.totalorder %s254, %s255
      %p266 = scmp.eq.s32.totalorder %s31, 0
      %p267 = por %p265, %p266
      %p268 = scmp.ne.s32.totalorder %s254, %s255
      %p269 = scmp.eq.s32.totalorder %s32, 3
      %p270 = por %p268, %p269
      %p272 = scmp.ne.s32.totalorder %s255, %s271
      %p273 = scmp.eq.s32.totalorder %s32, 0
      %p274 = por %p272, %p273
      %s275 = ssub.s32 %s34, %s41
      %p276 = scmp.eq.s32.totalorder %s275, 0
      %s278 = sadd.s32 %s277, 1
      %s279 = scalar_select %p276, %s277, %s278
      %p282 = pneg %p276
      %p283 = scmp.eq.s32.totalorder %s26, 3
      %p284 = por %p282, %p283
      %p285 = scmp.ne.s32.totalorder %s277, %s280
      %p286 = scmp.eq.s32.totalorder %s26, 0
      %p287 = por %p285, %p286
      %p288 = scmp.ne.s32.totalorder %s277, %s280
      %p289 = scmp.eq.s32.totalorder %s31, 3
      %p290 = por %p288, %p289
      %p291 = scmp.ne.s32.totalorder %s280, %s281
      %p292 = scmp.eq.s32.totalorder %s31, 0
      %p293 = por %p291, %p292
      %p294 = scmp.ne.s32.totalorder %s280, %s281
      %p295 = scmp.eq.s32.totalorder %s32, 3
      %p296 = por %p294, %p295
      %p298 = scmp.ne.s32.totalorder %s281, %s297
      %p299 = scmp.eq.s32.totalorder %s32, 0
      %p300 = por %p298, %p299
      %s301 = ssub.s32 %s34, %s41
      %p302 = scmp.eq.s32.totalorder %s301, 0
      %s304 = sadd.s32 %s303, 1
      %s305 = scalar_select %p302, %s303, %s304
      %p308 = pneg %p302
      %p309 = scmp.eq.s32.totalorder %s26, 3
      %p310 = por %p308, %p309
      %p311 = scmp.ne.s32.totalorder %s303, %s306
      %p312 = scmp.eq.s32.totalorder %s26, 0
      %p313 = por %p311, %p312
      %p314 = scmp.ne.s32.totalorder %s303, %s306
      %p315 = scmp.eq.s32.totalorder %s31, 3
      %p316 = por %p314, %p315
      %p317 = scmp.ne.s32.totalorder %s306, %s307
      %p318 = scmp.eq.s32.totalorder %s31, 0
      %p319 = por %p317, %p318
      %p320 = scmp.ne.s32.totalorder %s306, %s307
      %p321 = scmp.eq.s32.totalorder %s32, 3
      %p322 = por %p320, %p321
      %p324 = scmp.ne.s32.totalorder %s307, %s323
      %p325 = scmp.eq.s32.totalorder %s32, 0
      %p326 = por %p324, %p325
      %s327 = ssub.s32 %s34, %s41
      %p328 = scmp.eq.s32.totalorder %s327, 0
      %s330 = sadd.s32 %s329, 1
      %s331 = scalar_select %p328, %s329, %s330
      %p334 = pneg %p328
      %p335 = scmp.eq.s32.totalorder %s26, 3
      %p336 = por %p334, %p335
      %p337 = scmp.ne.s32.totalorder %s329, %s332
      %p338 = scmp.eq.s32.totalorder %s26, 0
      %p339 = por %p337, %p338
      %p340 = scmp.ne.s32.totalorder %s329, %s332
      %p341 = scmp.eq.s32.totalorder %s31, 3
      %p342 = por %p340, %p341
      %p343 = scmp.ne.s32.totalorder %s332, %s333
      %p344 = scmp.eq.s32.totalorder %s31, 0
      %p345 = por %p343, %p344
      %p346 = scmp.ne.s32.totalorder %s332, %s333
      %p347 = scmp.eq.s32.totalorder %s32, 3
      %p348 = por %p346, %p347
      %p350 = scmp.ne.s32.totalorder %s333, %s349
      %p351 = scmp.eq.s32.totalorder %s32, 0
      %p352 = por %p350, %p351
      %s353 = ssub.s32 %s34, %s41
      %p354 = scmp.eq.s32.totalorder %s353, 0
      %s356 = sadd.s32 %s355, 1
      %s357 = scalar_select %p354, %s355, %s356
      %p360 = pneg %p354
      %p361 = scmp.eq.s32.totalorder %s26, 3
      %p362 = por %p360, %p361
      %p363 = scmp.ne.s32.totalorder %s355, %s358
      %p364 = scmp.eq.s32.totalorder %s26, 0
      %p365 = por %p363, %p364
      %p366 = scmp.ne.s32.totalorder %s355, %s358
      %p367 = scmp.eq.s32.totalorder %s31, 3
      %p368 = por %p366, %p367
      %p369 = scmp.ne.s32.totalorder %s358, %s359
      %p370 = scmp.eq.s32.totalorder %s31, 0
      %p371 = por %p369, %p370
      %p372 = scmp.ne.s32.totalorder %s358, %s359
      %p373 = scmp.eq.s32.totalorder %s32, 3
      %p374 = por %p372, %p373
      %p376 = scmp.ne.s32.totalorder %s359, %s375
      %p377 = scmp.eq.s32.totalorder %s32, 0
      %p378 = por %p376, %p377
      %s379 = ssub.s32 %s33, %s45
      %p380 = scmp.eq.s32.totalorder %s379, 0
      %s382 = sadd.s32 %s381, 1
      %s383 = scalar_select %p380, %s381, %s382
      %p386 = pneg %p380
      %p387 = scmp.eq.s32.totalorder %s26, 3
      %p388 = por %p386, %p387
      %p389 = scmp.ne.s32.totalorder %s381, %s384
      %p390 = scmp.eq.s32.totalorder %s26, 0
      %p391 = por %p389, %p390
      %p392 = scmp.ne.s32.totalorder %s381, %s384
      %p393 = scmp.eq.s32.totalorder %s31, 3
      %p394 = por %p392, %p393
      %p395 = scmp.ne.s32.totalorder %s384, %s385
      %p396 = scmp.eq.s32.totalorder %s31, 0
      %p397 = por %p395, %p396
      %p398 = scmp.ne.s32.totalorder %s384, %s385
      %p399 = scmp.eq.s32.totalorder %s32, 3
      %p400 = por %p398, %p399
      %p402 = scmp.ne.s32.totalorder %s385, %s401
      %p403 = scmp.eq.s32.totalorder %s32, 0
      %p404 = por %p402, %p403
      %p405 = scmp.le.s32.totalorder 1, %s26
      %p406 = scmp.lt.s32.totalorder %s26, 5
      %p407 = pnand %p405, %p406
      %p408 = pneg %p407
      // Predicated region
      $region9: #{architecture_forward.1} parent=5 // pred_check
        _
      $region10: #{architecture_forward.1} parent=5 // pred_check_branch
        %410 = sbr.rel (%p407) target = $region12
      $region11: #{architecture_forward.1} parent=5 // pred_region
        %s411 = ssub.s32 %s26, 1
        // Predicated region
        $region13: #{architecture_forward.1} parent=11 // pred_check
          %p412 = pneg %p111
        $region14: #{architecture_forward.1} parent=11 // pred_check_branch
          %414 = sbr.rel (%p412) target = $region16
        $region15: #{architecture_forward.1} parent=11 // pred_region
          %416 = vsyncadd [#allocation5], 0
          %s418 = sshll.u32 %s2, 4
          %s419 = int_to_ptr.vmem [resolvable:$true] %s418
          %421 = dma.vmem_to_smem %s419, 32, [#allocation3], [#allocation5]
        $region16: #{architecture_forward.1} parent=11 // pred_fallthru
          _
      $region12: #{architecture_forward.1} parent=5 // pred_fallthru
        _
      %p422 = scmp.lt.s32.totalorder %s26, 4
      // Predicated region
      $region17: #{architecture_forward.1} parent=5 // pred_check
        %p423 = pneg %p422
      $region18: #{architecture_forward.1} parent=5 // pred_check_branch
        %425 = sbr.rel (%p423) target = $region20
      $region19: #{architecture_forward.1} parent=5 // pred_region
        // Predicated region
        $region21: #{architecture_forward.1} parent=19 // pred_check
          %p426 = pneg %p58
        $region22: #{architecture_forward.1} parent=19 // pred_check_branch
          %428 = sbr.rel (%p426) target = $region24
        $region23: #{architecture_forward.1} parent=19 // pred_region
          %p429 = scmp.lt.s32.totalorder %s33, 1
          %s430 = scalar_select %p429, %s33, 1
          %s431 = smul.addr %s430, 2
          %s432 = smul.addr %s431, 8
          %s433 = scalar_lea.vmem %s0, %s432
        $region24: #{architecture_forward.1} parent=19 // pred_fallthru
          _
        // Predicated region
        $region25: #{architecture_forward.1} parent=19 // pred_check
          %p434 = pneg %p84
        $region26: #{architecture_forward.1} parent=19 // pred_check_branch
          %436 = sbr.rel (%p434) target = $region28
        $region27: #{architecture_forward.1} parent=19 // pred_region
          %p437 = scmp.lt.s32.totalorder %s33, 1
          %s438 = scalar_select %p437, %s33, 1
          %s439 = smul.addr %s438, 2
          %s440 = smul.addr %s439, 8
          %s441 = scalar_lea.vmem %s1, %s440
        $region28: #{architecture_forward.1} parent=19 // pred_fallthru
          _
        // Predicated region
        $region29: #{architecture_forward.1} parent=19 // pred_check
          %p442 = pneg %p131
        $region30: #{architecture_forward.1} parent=19 // pred_check_branch
          %444 = sbr.rel (%p442) target = $region32
        $region31: #{architecture_forward.1} parent=19 // pred_region
          %p445 = scmp.lt.s32.totalorder %s34, 1
          %s446 = scalar_select %p445, %s34, 1
          %s447 = smul.addr %s446, 16
          %s448 = smul.addr %s447, 4
          %s449 = scalar_lea.vmem %s3, %s448
        $region32: #{architecture_forward.1} parent=19 // pred_fallthru
          _
        // Predicated region
        $region33: #{architecture_forward.1} parent=19 // pred_check
          %p450 = pneg %p157
        $region34: #{architecture_forward.1} parent=19 // pred_check_branch
          %452 = sbr.rel (%p450) target = $region36
        $region35: #{architecture_forward.1} parent=19 // pred_region
          %p453 = scmp.lt.s32.totalorder %s34, 1
          %s454 = scalar_select %p453, %s34, 1
          %s455 = scalar_lea.vmem %s4, %s454
        $region36: #{architecture_forward.1} parent=19 // pred_fallthru
          _
        // Predicated region
        $region37: #{architecture_forward.1} parent=19 // pred_check
          %p456 = pneg %p183
        $region38: #{architecture_forward.1} parent=19 // pred_check_branch
          %458 = sbr.rel (%p456) target = $region40
        $region39: #{architecture_forward.1} parent=19 // pred_region
          %p459 = scmp.lt.s32.totalorder %s34, 1
          %s460 = scalar_select %p459, %s34, 1
          %s461 = smul.addr %s460, 16
          %s462 = smul.addr %s461, 4
          %s463 = scalar_lea.vmem %s5, %s462
        $region40: #{architecture_forward.1} parent=19 // pred_fallthru
          _
        // Predicated region
        $region41: #{architecture_forward.1} parent=19 // pred_check
          %p464 = pneg %p209
        $region42: #{architecture_forward.1} parent=19 // pred_check_branch
          %466 = sbr.rel (%p464) target = $region44
        $region43: #{architecture_forward.1} parent=19 // pred_region
          %p467 = scmp.lt.s32.totalorder %s34, 1
          %s468 = scalar_select %p467, %s34, 1
          %s469 = scalar_lea.vmem %s6, %s468
        $region44: #{architecture_forward.1} parent=19 // pred_fallthru
          _
        // Predicated region
        $region45: #{architecture_forward.1} parent=19 // pred_check
          %p470 = pneg %p235
        $region46: #{architecture_forward.1} parent=19 // pred_check_branch
          %472 = sbr.rel (%p470) target = $region48
        $region47: #{architecture_forward.1} parent=19 // pred_region
          %p473 = scmp.lt.s32.totalorder %s34, 1
          %s474 = scalar_select %p473, %s34, 1
          %s475 = smul.addr %s474, 16
          %s476 = smul.addr %s475, 4
          %s477 = scalar_lea.vmem %s7, %s476
        $region48: #{architecture_forward.1} parent=19 // pred_fallthru
          _
        // Predicated region
        $region49: #{architecture_forward.1} parent=19 // pred_check
          %p478 = pneg %p261
        $region50: #{architecture_forward.1} parent=19 // pred_check_branch
          %480 = sbr.rel (%p478) target = $region52
        $region51: #{architecture_forward.1} parent=19 // pred_region
          %p481 = scmp.lt.s32.totalorder %s34, 1
          %s482 = scalar_select %p481, %s34, 1
          %s483 = scalar_lea.vmem %s8, %s482
        $region52: #{architecture_forward.1} parent=19 // pred_fallthru
          _
        // Predicated region
        $region53: #{architecture_forward.1} parent=19 // pred_check
          %p484 = pneg %p287
        $region54: #{architecture_forward.1} parent=19 // pred_check_branch
          %486 = sbr.rel (%p484) target = $region56
        $region55: #{architecture_forward.1} parent=19 // pred_region
          %s487 = sand.u32 %s277, 1
          %s488 = scalar_lea.sflag [#allocation4], %s487
          %s489 = sand.u32 %s277, 1
          %s490 = smul.addr %s489, 64
          %s491 = scalar_lea.vmem [#allocation6], %s490
          %493 = vsyncadd %s488, 0
          %s494 = smul.addr %s34, 16
          %s495 = smul.addr %s494, 4
          %s496 = scalar_lea.hbm %s9, %s495
          %s497 = sshll.u32 %s496, 4
          %s498 = int_to_ptr.hbm [resolvable:$true] %s497
          %s499 = sshll.u32 %s491, 4
          %s500 = int_to_ptr.vmem [resolvable:$true] %s499
          %505 = dma.hbm_to_vmem [thread:$0]  %s498, 1024, %s500, %s488, 64, 64, 4
        $region56: #{architecture_forward.1} parent=19 // pred_fallthru
          _
        // Predicated region
        $region57: #{architecture_forward.1} parent=19 // pred_check
          %p506 = pneg %p313
        $region58: #{architecture_forward.1} parent=19 // pred_check_branch
          %508 = sbr.rel (%p506) target = $region60
        $region59: #{architecture_forward.1} parent=19 // pred_region
          %p509 = scmp.lt.s32.totalorder %s34, 1
          %s510 = scalar_select %p509, %s34, 1
          %s511 = scalar_lea.vmem %s10, %s510
        $region60: #{architecture_forward.1} parent=19 // pred_fallthru
          _
        // Predicated region
        $region61: #{architecture_forward.1} parent=19 // pred_check
          %p512 = pneg %p339
        $region62: #{architecture_forward.1} parent=19 // pred_check_branch
          %514 = sbr.rel (%p512) target = $region64
        $region63: #{architecture_forward.1} parent=19 // pred_region
          %s515 = sand.u32 %s329, 1
          %s516 = scalar_lea.sflag [#allocation8], %s515
          %s517 = sand.u32 %s329, 1
          %s518 = smul.addr %s517, 64
          %s519 = scalar_lea.vmem [#allocation7], %s518
          %521 = vsyncadd %s516, 0
          %s522 = smul.addr %s34, 16
          %s523 = smul.addr %s522, 4
          %s524 = scalar_lea.hbm %s11, %s523
          %s525 = sshll.u32 %s524, 4
          %s526 = int_to_ptr.hbm [resolvable:$true] %s525
          %s527 = sshll.u32 %s519, 4
          %s528 = int_to_ptr.vmem [resolvable:$true] %s527
          %533 = dma.hbm_to_vmem [thread:$0]  %s526, 1024, %s528, %s516, 64, 64, 4
        $region64: #{architecture_forward.1} parent=19 // pred_fallthru
          _
        // Predicated region
        $region65: #{architecture_forward.1} parent=19 // pred_check
          %p534 = pneg %p365
        $region66: #{architecture_forward.1} parent=19 // pred_check_branch
          %536 = sbr.rel (%p534) target = $region68
        $region67: #{architecture_forward.1} parent=19 // pred_region
          %p537 = scmp.lt.s32.totalorder %s34, 1
          %s538 = scalar_select %p537, %s34, 1
          %s539 = scalar_lea.vmem %s12, %s538
        $region68: #{architecture_forward.1} parent=19 // pred_fallthru
          _
      $region20: #{architecture_forward.1} parent=5 // pred_fallthru
        _
      %p540 = scmp.le.s32.totalorder 1, %s26
      %p541 = scmp.lt.s32.totalorder %s26, 5
      %p542 = pnand %p540, %p541
      %p543 = pneg %p542
      // Predicated region
      $region69: #{architecture_forward.1} parent=5 // pred_check
        _
      $region70: #{architecture_forward.1} parent=5 // pred_check_branch
        %545 = sbr.rel (%p542) target = $region72
      $region71: #{architecture_forward.1} parent=5 // pred_region
        %s546 = ssub.s32 %s26, 1
        // Predicated region
        $region73: #{architecture_forward.1} parent=71 // pred_check
          %p547 = pneg %p111
        $region74: #{architecture_forward.1} parent=71 // pred_check_branch
          %549 = sbr.rel (%p547) target = $region76
        $region75: #{architecture_forward.1} parent=71 // pred_region
          %551 = dma.done [#allocation5], 32
        $region76: #{architecture_forward.1} parent=71 // pred_fallthru
          _
        %s552 = sand.u32 %s280, 1
        %s553 = scalar_lea.sflag [#allocation4], %s552
        %s554 = sand.u32 %s280, 1
        %s555 = smul.addr %s554, 64
        %s556 = scalar_lea.vmem [#allocation6], %s555
        // Predicated region
        $region77: #{architecture_forward.1} parent=71 // pred_check
          %p557 = pneg %p293
        $region78: #{architecture_forward.1} parent=71 // pred_check_branch
          %559 = sbr.rel (%p557) target = $region80
        $region79: #{architecture_forward.1} parent=71 // pred_region
          %561 = dma.done %s553, 1024
        $region80: #{architecture_forward.1} parent=71 // pred_fallthru
          _
        %s562 = sand.u32 %s332, 1
        %s563 = scalar_lea.sflag [#allocation8], %s562
        %s564 = sand.u32 %s332, 1
        %s565 = smul.addr %s564, 64
        %s566 = scalar_lea.vmem [#allocation7], %s565
        // Predicated region
        $region81: #{architecture_forward.1} parent=71 // pred_check
          %p567 = pneg %p345
        $region82: #{architecture_forward.1} parent=71 // pred_check_branch
          %569 = sbr.rel (%p567) target = $region84
        $region83: #{architecture_forward.1} parent=71 // pred_region
          %571 = dma.done %s563, 1024
        $region84: #{architecture_forward.1} parent=71 // pred_fallthru
          _
        %572 = sfence
        %p573 = scmp.lt.s32.totalorder %s35, 1
        %s574 = scalar_select %p573, %s35, 1
        %s575 = smul.addr %s574, 2
        %s576 = smul.addr %s575, 8
        %s577 = scalar_lea.vmem %s0, %s576
        %p578 = pneg %p64
        %p579 = pneg %p61
        %p580 = scmp.lt.s32.totalorder %s35, 1
        %s581 = scalar_select %p580, %s35, 1
        %s582 = smul.addr %s581, 2
        %s583 = smul.addr %s582, 8
        %s584 = scalar_lea.vmem %s1, %s583
        %p585 = pneg %p90
        %p586 = pneg %p87
        %p587 = pneg %p111
        %p588 = pneg %p108
        %p589 = scmp.lt.s32.totalorder %s36, 1
        %s590 = scalar_select %p589, %s36, 1
        %s591 = smul.addr %s590, 16
        %s592 = smul.addr %s591, 4
        %s593 = scalar_lea.vmem %s3, %s592
        %p594 = pneg %p137
        %p595 = pneg %p134
        %p596 = scmp.lt.s32.totalorder %s36, 1
        %s597 = scalar_select %p596, %s36, 1
        %s598 = scalar_lea.vmem %s4, %s597
        %p599 = pneg %p163
        %p600 = pneg %p160
        %p601 = scmp.lt.s32.totalorder %s36, 1
        %s602 = scalar_select %p601, %s36, 1
        %s603 = smul.addr %s602, 16
        %s604 = smul.addr %s603, 4
        %s605 = scalar_lea.vmem %s5, %s604
        %p606 = pneg %p189
        %p607 = pneg %p186
        %p608 = scmp.lt.s32.totalorder %s36, 1
        %s609 = scalar_select %p608, %s36, 1
        %s610 = scalar_lea.vmem %s6, %s609
        %p611 = pneg %p215
        %p612 = pneg %p212
        %p613 = scmp.lt.s32.totalorder %s36, 1
        %s614 = scalar_select %p613, %s36, 1
        %s615 = smul.addr %s614, 16
        %s616 = smul.addr %s615, 4
        %s617 = scalar_lea.vmem %s7, %s616
        %p618 = pneg %p241
        %p619 = pneg %p238
        %p620 = scmp.lt.s32.totalorder %s36, 1
        %s621 = scalar_select %p620, %s36, 1
        %s622 = scalar_lea.vmem %s8, %s621
        %p623 = pneg %p267
        %p624 = pneg %p264
        %s625 = sand.u32 %s280, 1
        %s626 = scalar_lea.sflag [#allocation4], %s625
        %s627 = sand.u32 %s280, 1
        %s628 = smul.addr %s627, 64
        %s629 = scalar_lea.vmem [#allocation6], %s628
        %p630 = pneg %p293
        %p631 = pneg %p290
        %p632 = scmp.lt.s32.totalorder %s36, 1
        %s633 = scalar_select %p632, %s36, 1
        %s634 = scalar_lea.vmem %s10, %s633
        %p635 = pneg %p319
        %p636 = pneg %p316
        %s637 = sand.u32 %s332, 1
        %s638 = scalar_lea.sflag [#allocation8], %s637
        %s639 = sand.u32 %s332, 1
        %s640 = smul.addr %s639, 64
        %s641 = scalar_lea.vmem [#allocation7], %s640
        %p642 = pneg %p345
        %p643 = pneg %p342
        %p644 = scmp.lt.s32.totalorder %s36, 1
        %s645 = scalar_select %p644, %s36, 1
        %s646 = scalar_lea.vmem %s12, %s645
        %p647 = pneg %p371
        %p648 = pneg %p368
        %p649 = pneg %p397
        %p650 = pneg %p394
        %p651 = scmp.lt.s32.totalorder %s35, 1
        %s652 = scalar_select %p651, %s35, 1
        %s653 = smul.addr %s652, 2
        %s654 = smul.addr %s653, 8
        %s655 = scalar_lea.vmem %s13, %s654
        %p656 = scmp.lt.s32.totalorder %s35, 1
        %s657 = scalar_select %p656, %s35, 1
        %s658 = smul.addr %s657, 2
        %s659 = smul.addr %s658, 8
        %s660 = scalar_lea.vmem %s0, %s659
        %p661 = scmp.lt.s32.totalorder %s35, 1
        %s662 = scalar_select %p661, %s35, 1
        %s663 = smul.addr %s662, 2
        %s664 = smul.addr %s663, 8
        %s665 = scalar_lea.vmem %s1, %s664
        %p666 = scmp.lt.s32.totalorder %s36, 1
        %s667 = scalar_select %p666, %s36, 1
        %s668 = smul.addr %s667, 16
        %s669 = smul.addr %s668, 4
        %s670 = scalar_lea.vmem %s3, %s669
        %p671 = scmp.lt.s32.totalorder %s36, 1
        %s672 = scalar_select %p671, %s36, 1
        %s673 = scalar_lea.vmem %s4, %s672
        %p674 = scmp.lt.s32.totalorder %s36, 1
        %s675 = scalar_select %p674, %s36, 1
        %s676 = smul.addr %s675, 16
        %s677 = smul.addr %s676, 4
        %s678 = scalar_lea.vmem %s5, %s677
        %p679 = scmp.lt.s32.totalorder %s36, 1
        %s680 = scalar_select %p679, %s36, 1
        %s681 = scalar_lea.vmem %s6, %s680
        %p682 = scmp.lt.s32.totalorder %s36, 1
        %s683 = scalar_select %p682, %s36, 1
        %s684 = smul.addr %s683, 16
        %s685 = smul.addr %s684, 4
        %s686 = scalar_lea.vmem %s7, %s685
        %p687 = scmp.lt.s32.totalorder %s36, 1
        %s688 = scalar_select %p687, %s36, 1
        %s689 = scalar_lea.vmem %s8, %s688
        %p690 = scmp.lt.s32.totalorder %s36, 1
        %s691 = scalar_select %p690, %s36, 1
        %s692 = scalar_lea.vmem %s10, %s691
        %p693 = scmp.lt.s32.totalorder %s36, 1
        %s694 = scalar_select %p693, %s36, 1
        %s695 = scalar_lea.vmem %s12, %s694
        %p696 = scmp.lt.s32.totalorder %s35, 1
        %s697 = scalar_select %p696, %s35, 1
        %s698 = smul.addr %s697, 2
        %s699 = smul.addr %s698, 8
        %s700 = scalar_lea.vmem %s13, %s699
        %p702 = scmp.eq.s32.totalorder %s36, 0
        // Predicated region
        $region85: #{architecture_forward.1} parent=71 // pred_check
          %p703 = pneg %p702
        $region86: #{architecture_forward.1} parent=71 // pred_check_branch
          %705 = sbr.rel (%p703) target = $region88
        $region87: #{architecture_forward.1} parent=71 // pred_region
          %v706 = vld [vmem:[%s660] sm:$0xff]
          %v707 = vld [vmem:[%s660 + $0x8] sm:$0xff]
          %708 = vst [vmem:[#allocation2] sm:$0xff] %v706
          %709 = vst [vmem:[#allocation2 + $0x8] sm:$0xff] %v707
        $region88: #{architecture_forward.1} parent=71 // pred_fallthru
          _
        %v710 = vld [vmem:[#allocation2] sm:$0xff]
        %v711 = vld [vmem:[#allocation2 + $0x8] sm:$0xff]
        %v712 = vld [vmem:[%s665] sm:$0xff]
        %v713 = vld [vmem:[%s665 + $0x8] sm:$0xff]
        %v714 = vpack.c.bf16 %v711, %v710
        %v715 = vld [vmem:[%s670] sm:$0xf]
        %v716 = vld [vmem:[%s670 + $0x4] sm:$0xf]
        %v717 = vld [vmem:[%s670 + $0x8] sm:$0xf]
        %v718 = vld [vmem:[%s670 + $0xc] sm:$0xf]
        %v719 = vld [vmem:[%s670 + $0x10] sm:$0xf]
        %v720 = vld [vmem:[%s670 + $0x14] sm:$0xf]
        %v721 = vld [vmem:[%s670 + $0x18] sm:$0xf]
        %v722 = vld [vmem:[%s670 + $0x1c] sm:$0xf]
        %v723 = vld [vmem:[%s670 + $0x20] sm:$0xf]
        %v724 = vld [vmem:[%s670 + $0x24] sm:$0xf]
        %v725 = vld [vmem:[%s670 + $0x28] sm:$0xf]
        %v726 = vld [vmem:[%s670 + $0x2c] sm:$0xf]
        %v727 = vld [vmem:[%s670 + $0x30] sm:$0xf]
        %v728 = vld [vmem:[%s670 + $0x34] sm:$0xf]
        %v729 = vld [vmem:[%s670 + $0x38] sm:$0xf]
        %v730 = vld [vmem:[%s670 + $0x3c] sm:$0xf]
        %v731 = vld [vmem:[%s673] sm:$0x1]
        %v733 = vperm.slane %v731, 0
        %v751 = vunpack.c.l.b16 %v715
        %v752 = vunpack.c.l.b16 %v716
        %v753 = vunpack.c.l.b16 %v717
        %v754 = vunpack.c.l.b16 %v718
        %v755 = vunpack.c.l.b16 %v719
        %v756 = vunpack.c.l.b16 %v720
        %v757 = vunpack.c.l.b16 %v721
        %v758 = vunpack.c.l.b16 %v722
        %v759 = vunpack.c.l.b16 %v723
        %v760 = vunpack.c.l.b16 %v724
        %v761 = vunpack.c.l.b16 %v725
        %v762 = vunpack.c.l.b16 %v726
        %v763 = vunpack.c.l.b16 %v727
        %v764 = vunpack.c.l.b16 %v728
        %v765 = vunpack.c.l.b16 %v729
        %v766 = vunpack.c.l.b16 %v730
        %v767 = vpack.c.b16 %v752, %v751
        %v768 = vpack.c.b16 %v754, %v753
        %v769 = vpack.c.b16 %v756, %v755
        %v770 = vpack.c.b16 %v758, %v757
        %v771 = vpack.c.b16 %v760, %v759
        %v772 = vpack.c.b16 %v762, %v761
        %v773 = vpack.c.b16 %v764, %v763
        %v774 = vpack.c.b16 %v766, %v765
        %783 = vmatpush.bf16.msra.mxu0 %v774
        %784 = vmatpush.bf16.msra.mxu0 %v773
        %785 = vmatpush.bf16.msra.mxu0 %v772
        %786 = vmatpush.bf16.msra.mxu0 %v771
        %787 = vmatpush.bf16.msra.mxu0 %v770
        %788 = vmatpush.bf16.msra.mxu0 %v769
        %789 = vmatpush.bf16.msra.mxu0 %v768
        %790 = vmatpush.bf16.msra.mxu0 %v767
        %791 = vmatmul.bf16.gmra.mxu0 %v714
        %v792 = vpop.f32.mrf.mxu0
        %v793 = vadd.f32 %v733, %v792
        %v794 = vpop.f32.mrf.mxu0
        %v795 = vadd.f32 %v733, %v794
        %796 = vdwg.mxu0
        %v797 = vpack.c.bf16 %v713, %v712
        %v798 = vld [vmem:[%s678] sm:$0xf]
        %v799 = vld [vmem:[%s678 + $0x4] sm:$0xf]
        %v800 = vld [vmem:[%s678 + $0x8] sm:$0xf]
        %v801 = vld [vmem:[%s678 + $0xc] sm:$0xf]
        %v802 = vld [vmem:[%s678 + $0x10] sm:$0xf]
        %v803 = vld [vmem:[%s678 + $0x14] sm:$0xf]
        %v804 = vld [vmem:[%s678 + $0x18] sm:$0xf]
        %v805 = vld [vmem:[%s678 + $0x1c] sm:$0xf]
        %v806 = vld [vmem:[%s678 + $0x20] sm:$0xf]
        %v807 = vld [vmem:[%s678 + $0x24] sm:$0xf]
        %v808 = vld [vmem:[%s678 + $0x28] sm:$0xf]
        %v809 = vld [vmem:[%s678 + $0x2c] sm:$0xf]
        %v810 = vld [vmem:[%s678 + $0x30] sm:$0xf]
        %v811 = vld [vmem:[%s678 + $0x34] sm:$0xf]
        %v812 = vld [vmem:[%s678 + $0x38] sm:$0xf]
        %v813 = vld [vmem:[%s678 + $0x3c] sm:$0xf]
        %v814 = vld [vmem:[%s681] sm:$0x1]
        %v816 = vperm.slane %v814, 0
        %v834 = vunpack.c.l.b16 %v798
        %v835 = vunpack.c.l.b16 %v799
        %v836 = vunpack.c.l.b16 %v800
        %v837 = vunpack.c.l.b16 %v801
        %v838 = vunpack.c.l.b16 %v802
        %v839 = vunpack.c.l.b16 %v803
        %v840 = vunpack.c.l.b16 %v804
        %v841 = vunpack.c.l.b16 %v805
        %v842 = vunpack.c.l.b16 %v806
        %v843 = vunpack.c.l.b16 %v807
        %v844 = vunpack.c.l.b16 %v808
        %v845 = vunpack.c.l.b16 %v809
        %v846 = vunpack.c.l.b16 %v810
        %v847 = vunpack.c.l.b16 %v811
        %v848 = vunpack.c.l.b16 %v812
        %v849 = vunpack.c.l.b16 %v813
        %v850 = vpack.c.b16 %v835, %v834
        %v851 = vpack.c.b16 %v837, %v836
        %v852 = vpack.c.b16 %v839, %v838
        %v853 = vpack.c.b16 %v841, %v840
        %v854 = vpack.c.b16 %v843, %v842
        %v855 = vpack.c.b16 %v845, %v844
        %v856 = vpack.c.b16 %v847, %v846
        %v857 = vpack.c.b16 %v849, %v848
        %866 = vmatpush.bf16.msra.mxu0 %v857
        %867 = vmatpush.bf16.msra.mxu0 %v856
        %868 = vmatpush.bf16.msra.mxu0 %v855
        %869 = vmatpush.bf16.msra.mxu0 %v854
        %870 = vmatpush.bf16.msra.mxu0 %v853
        %871 = vmatpush.bf16.msra.mxu0 %v852
        %872 = vmatpush.bf16.msra.mxu0 %v851
        %873 = vmatpush.bf16.msra.mxu0 %v850
        %874 = vmatmul.bf16.gmra.mxu0 %v797
        %v875 = vpop.f32.mrf.mxu0
        %v876 = vadd.f32 %v816, %v875
        %v877 = vpop.f32.mrf.mxu0
        %v878 = vadd.f32 %v816, %v877
        %879 = vdwg.mxu0
        %v880 = vlaneseq
        %v881 = vshrl.u32 %v880, 7
        %v882 = vadd.s32 %v881, 8
        %v883 = vlaneseq
        %v884 = vand.u32 %v883, 127
        %vm885 = vcmp.lt.s32.totalorder %v884, %v881
        %vm886 = vcmp.lt.s32.totalorder %v884, %v882
        %vm887 = vcmp.eq.s32.totalorder %v881, 0
        %vm888 = vcmp.eq.s32.totalorder %v882, 0
        %v889 = vsub.s32 %v884, %v881
        %v890 = vsub.s32 %v884, %v882
        %vm891 = vcmp.lt.s32.totalorder %v889, 0
        %v892 = vsub.s32 0, %v889
        %v893 = vsel %vm891, %v892, %v889
        %vm894 = vcmp.lt.s32.totalorder %v890, 0
        %v895 = vsub.s32 0, %v890
        %v896 = vsel %vm894, %v895, %v890
        %v897 = vcvt.s32.f32 %v893
        %v898 = vcvt.s32.f32 %v896
        %vm899 = vcmp.gt.s32.totalorder %v881, %v884
        %vm900 = vcmp.gt.s32.totalorder %v882, %v884
        %v901 = vsel %vm899, 1, 0
        %v902 = vsel %vm900, 1, 0
        %v903 = vcvt.s32.f32 %v901
        %v904 = vcvt.s32.f32 %v902
        %v905 = vpack.c.bf16 %v904, %v903
        %vm906 = vcmp.lt.s32.totalorder %v884, 32
        %vm907 = vcmp.lt.s32.totalorder %v884, 64
        %v908 = vld [vmem:[%s686] sm:$0xf]
        %v909 = vld [vmem:[%s686 + $0x4] sm:$0xf]
        %v910 = vld [vmem:[%s686 + $0x8] sm:$0xf]
        %v911 = vld [vmem:[%s686 + $0xc] sm:$0xf]
        %v912 = vld [vmem:[%s686 + $0x10] sm:$0xf]
        %v913 = vld [vmem:[%s686 + $0x14] sm:$0xf]
        %v914 = vld [vmem:[%s686 + $0x18] sm:$0xf]
        %v915 = vld [vmem:[%s686 + $0x1c] sm:$0xf]
        %v916 = vld [vmem:[%s686 + $0x20] sm:$0xf]
        %v917 = vld [vmem:[%s686 + $0x24] sm:$0xf]
        %v918 = vld [vmem:[%s686 + $0x28] sm:$0xf]
        %v919 = vld [vmem:[%s686 + $0x2c] sm:$0xf]
        %v920 = vld [vmem:[%s686 + $0x30] sm:$0xf]
        %v921 = vld [vmem:[%s686 + $0x34] sm:$0xf]
        %v922 = vld [vmem:[%s686 + $0x38] sm:$0xf]
        %v923 = vld [vmem:[%s686 + $0x3c] sm:$0xf]
        %v924 = vmax.f32 %v793, 1e-24
        %v925 = vmax.f32 %v795, 1e-24
        %v926 = vrsqrt.pop %v924
        %v927 = vmul.f32 %v926, %v924
        %v928 = vmul.f32 %v927, %v926
        %v929 = vmul.f32 0.5, %v928
        %v930 = vsub.f32 1.5, %v929
        %v931 = vmul.f32 %v926, %v930
        %v932 = vmul.f32 %v924, %v931
        %vm933 = vcmp.eq.f32.partialorder %v924, inf
        %v934 = vsel %vm933, %v924, %v932
        %vm935 = vcmp.eq.f32.partialorder %v924, 0.0
        %v936 = vand.u32 %v924, 2147483648
        %v937 = vsel %vm935, %v936, %v934
        %v938 = vrsqrt.pop %v925
        %v939 = vmul.f32 %v938, %v925
        %v940 = vmul.f32 %v939, %v938
        %v941 = vmul.f32 0.5, %v940
        %v942 = vsub.f32 1.5, %v941
        %v943 = vmul.f32 %v938, %v942
        %v944 = vmul.f32 %v925, %v943
        %vm945 = vcmp.eq.f32.partialorder %v925, inf
        %v946 = vsel %vm945, %v925, %v944
        %vm947 = vcmp.eq.f32.partialorder %v925, 0.0
        %v948 = vand.u32 %v925, 2147483648
        %v949 = vsel %vm947, %v948, %v946
        %v950 = vsel %vm906, %v793, %v937
        %v951 = vsel %vm906, %v795, %v949
        %v952 = vmul.f32 %v793, %v793
        %v953 = vmul.f32 %v795, %v795
        %v954 = vsel %vm906, %v952, %v793
        %v955 = vsel %vm906, %v953, %v795
        %vm956 = vcmask 523264
        %v957 = vsel %vm956, %v954, 0.0
        %958 = vadd.xlane.f32.xlu0 %v957
        %v959 = vpop.xlane.xlu0 %958
        %v960 = vsel %vm956, %v955, 0.0
        %961 = vadd.xlane.f32.xlu0 %v960
        %v962 = vpop.xlane.xlu0 %961
        %v963 = vpack.c.bf16 %v951, %v950
        %v965 = vsel %vm956, %v963, 0
        %967 = vmatpush.bf16.xpose.msra.mxu0 0
        %968 = vmatpush.bf16.xpose.msra.mxu0 0
        %969 = vmatpush.bf16.xpose.msra.mxu0 0
        %970 = vmatpush.bf16.xpose.msra.mxu0 0
        %971 = vmatpush.bf16.xpose.msra.mxu0 0
        %972 = vmatpush.bf16.xpose.msra.mxu0 0
        %973 = vmatpush.bf16.xpose.msra.mxu0 0
        %974 = vmatpush.bf16.xpose.msra.mxu0 %v965
        %975 = vmatmul.bf16.gmra.mxu0 %v965
        %v976 = vpop.f32.mrf.mxu0
        %v977 = vadd.f32 0.0, %v976
        %v978 = vpop.f32.mrf.mxu0
        %v979 = vadd.f32 0.0, %v978
        %980 = vdwg.mxu0
        %v981 = vmul.f32 %v977, 2.0
        %v982 = vmul.f32 %v979, 2.0
        %v983 = vsub.f32 %v981, %v959
        %v984 = vsub.f32 %v982, %v962
        %985 = vxpose.xlu0.b32.start [1/16] %v959, 128
        %986 = vxpose.xlu0.b32.cont [2/16] %v962, 128
        %987 = vxpose.xlu0.b32.cont [3/16] 0.0, 128
        %988 = vxpose.xlu0.b32.cont [4/16] 0.0, 128
        %989 = vxpose.xlu0.b32.cont [5/16] 0.0, 128
        %990 = vxpose.xlu0.b32.cont [6/16] 0.0, 128
        %991 = vxpose.xlu0.b32.cont [7/16] 0.0, 128
        %992 = vxpose.xlu0.b32.cont [8/16] 0.0, 128
        %993 = vxpose.xlu0.b32.cont [9/16] 0.0, 128
        %994 = vxpose.xlu0.b32.cont [10/16] 0.0, 128
        %995 = vxpose.xlu0.b32.cont [11/16] 0.0, 128
        %996 = vxpose.xlu0.b32.cont [12/16] 0.0, 128
        %997 = vxpose.xlu0.b32.cont [13/16] 0.0, 128
        %998 = vxpose.xlu0.b32.cont [14/16] 0.0, 128
        %999 = vxpose.xlu0.b32.cont [15/16] 0.0, 128
        %1000 = vxpose.xlu0.b32.end [16/16] 0.0, 128
        %v1001 = vpop.trf.xlu0
        %v1002 = vpop.trf.xlu0
        %v1003 = vpop.trf.xlu0
        %v1004 = vpop.trf.xlu0
        %v1005 = vpop.trf.xlu0
        %v1006 = vpop.trf.xlu0
        %v1007 = vpop.trf.xlu0
        %v1008 = vpop.trf.xlu0
        %v1009 = vpop.trf.xlu0
        %v1010 = vpop.trf.xlu0
        %v1011 = vpop.trf.xlu0
        %v1012 = vpop.trf.xlu0
        %v1013 = vpop.trf.xlu0
        %v1014 = vpop.trf.xlu0
        %v1015 = vpop.trf.xlu0
        %v1016 = vpop.trf.xlu0
        %v1017 = vperm.slane %v1001, 0
        %v1018 = vsub.f32 %v983, %v1017
        %v1019 = vsub.f32 %v984, %v1017
        %v1020 = vmul.f32 %v1018, 0.17677669
        %v1021 = vmul.f32 %v1019, 0.17677669
        %v1022 = vsel %vm885, %v1020, -1e+32
        %v1023 = vsel %vm886, %v1021, -1e+32
        %vm1024 = vcmask 130048
        %v1025 = vsel %vm1024, %v1022, -inf
        %1026 = vmax.xlane.f32.xlu0 %v1025
        %v1027 = vpop.xlane.xlu0 %1026
        %v1028 = vsel %vm1024, %v1023, -inf
        %1029 = vmax.xlane.f32.xlu0 %v1028
        %v1030 = vpop.xlane.xlu0 %1029
        %v1031 = vsub.f32 %v1022, %v1027
        %v1032 = vsub.f32 %v1023, %v1030
        %v1033 = vmul.f32 %v1031, 1.442695
        %v1034 = vpow.pop %v1033
        %v1035 = vmul.f32 %v1032, 1.442695
        %v1036 = vpow.pop %v1035
        %v1037 = vsel %vm1024, %v1034, 0.0
        %1038 = vadd.xlane.f32.xlu0 %v1037
        %v1039 = vpop.xlane.xlu0 %1038
        %v1040 = vsel %vm1024, %v1036, 0.0
        %1041 = vadd.xlane.f32.xlu0 %v1040
        %v1042 = vpop.xlane.xlu0 %1041
        %v1043 = vrcp.pop %v1039
        %v1044 = vrcp.pop %v1042
        %v1045 = vmul.f32 %v1034, %v1043
        %v1046 = vmul.f32 %v1036, %v1044
        %v1047 = vsel %vm887, 0.0, %v1045
        %v1048 = vsel %vm888, 0.0, %v1046
        %v1049 = vpack.c.bf16 %v1048, %v1047
        %v1051 = vsel %vm1024, %v1049, 0
        %1053 = vmatpush.bf16.msra.mxu0 0
        %1054 = vmatpush.bf16.msra.mxu0 0
        %1055 = vmatpush.bf16.msra.mxu0 0
        %1056 = vmatpush.bf16.msra.mxu0 0
        %1057 = vmatpush.bf16.msra.mxu0 0
        %1058 = vmatpush.bf16.msra.mxu0 0
        %1059 = vmatpush.bf16.msra.mxu0 0
        %1060 = vmatpush.bf16.msra.mxu0 %v905
        %1061 = vmatmul.bf16.gmra.mxu0 %v1051
        %v1062 = vpop.f32.mrf.mxu0
        %v1063 = vadd.f32 0.0, %v1062
        %v1064 = vpop.f32.mrf.mxu0
        %v1065 = vadd.f32 0.0, %v1064
        %1066 = vdwg.mxu0
        %v1067 = vmax.f32 %v1063, 0.0
        %v1068 = vmax.f32 %v1065, 0.0
        %v1069 = vmul.f32 %v1067, %v897
        %v1070 = vmul.f32 %v1068, %v898
        %s1071 = smul.u32 %s36, 128
        %s1072 = sld [smem:[#allocation3 + %s1071]]
        %v1073 = vstv %s1072
        %v1074 = vmul.f32 %v1069, %v1073
        %v1075 = vmul.f32 %v1070, %v1073
        %v1076 = vrsqrt.pop %v1074
        %v1077 = vmul.f32 %v1076, %v1074
        %v1078 = vmul.f32 %v1077, %v1076
        %v1079 = vmul.f32 0.5, %v1078
        %v1080 = vsub.f32 1.5, %v1079
        %v1081 = vmul.f32 %v1076, %v1080
        %v1082 = vmul.f32 %v1074, %v1081
        %vm1083 = vcmp.eq.f32.partialorder %v1074, inf
        %v1084 = vsel %vm1083, %v1074, %v1082
        %vm1085 = vcmp.eq.f32.partialorder %v1074, 0.0
        %v1086 = vand.u32 %v1074, 2147483648
        %v1087 = vsel %vm1085, %v1086, %v1084
        %v1088 = vrsqrt.pop %v1075
        %v1089 = vmul.f32 %v1088, %v1075
        %v1090 = vmul.f32 %v1089, %v1088
        %v1091 = vmul.f32 0.5, %v1090
        %v1092 = vsub.f32 1.5, %v1091
        %v1093 = vmul.f32 %v1088, %v1092
        %v1094 = vmul.f32 %v1075, %v1093
        %vm1095 = vcmp.eq.f32.partialorder %v1075, inf
        %v1096 = vsel %vm1095, %v1075, %v1094
        %vm1097 = vcmp.eq.f32.partialorder %v1075, 0.0
        %v1098 = vand.u32 %v1075, 2147483648
        %v1099 = vsel %vm1097, %v1098, %v1096
        %v1100 = vsub.f32 0.0, %v1087
        %v1101 = vsub.f32 0.0, %v1099
        %v1102 = vmul.f32 %v1100, 1.442695
        %v1103 = vpow.pop %v1102
        %v1104 = vmul.f32 %v1101, 1.442695
        %v1105 = vpow.pop %v1104
        %v1106 = vmax.f32 %v1103, 1e-05
        %v1107 = vmax.f32 %v1105, 1e-05
        %v1108 = vmin.f32 %v1106, 100000.0
        %v1109 = vmin.f32 %v1107, 100000.0
        %v1110 = vmul.f32 %v1020, %v1108
        %v1111 = vmul.f32 %v1021, %v1109
        %v1112 = vsel %vm885, %v1110, -1e+32
        %v1113 = vsel %vm886, %v1111, -1e+32
        %v1114 = vsel %vm1024, %v1112, -inf
        %1115 = vmax.xlane.f32.xlu0 %v1114
        %v1116 = vpop.xlane.xlu0 %1115
        %v1117 = vsel %vm1024, %v1113, -inf
        %1118 = vmax.xlane.f32.xlu0 %v1117
        %v1119 = vpop.xlane.xlu0 %1118
        %v1120 = vsub.f32 %v1112, %v1116
        %v1121 = vsub.f32 %v1113, %v1119
        %v1122 = vmul.f32 %v1120, 1.442695
        %v1123 = vpow.pop %v1122
        %v1124 = vmul.f32 %v1121, 1.442695
        %v1125 = vpow.pop %v1124
        %v1126 = vsel %vm1024, %v1123, 0.0
        %1127 = vadd.xlane.f32.xlu0 %v1126
        %v1128 = vpop.xlane.xlu0 %1127
        %v1129 = vsel %vm1024, %v1125, 0.0
        %1130 = vadd.xlane.f32.xlu0 %v1129
        %v1131 = vpop.xlane.xlu0 %1130
        %v1132 = vrcp.pop %v1128
        %v1133 = vrcp.pop %v1131
        %v1134 = vmul.f32 %v1123, %v1132
        %v1135 = vmul.f32 %v1125, %v1133
        %v1136 = vsel %vm887, 0.0, %v1134
        %v1137 = vsel %vm888, 0.0, %v1135
        %v1138 = vpack.c.bf16 %v878, %v876
        %v1139 = vpack.c.bf16 %v1137, %v1136
        %v1141 = vsel %vm1024, %v1139, 0
        %1143 = vmatpush.bf16.msra.mxu0 0
        %1144 = vmatpush.bf16.msra.mxu0 0
        %1145 = vmatpush.bf16.msra.mxu0 0
        %1146 = vmatpush.bf16.msra.mxu0 0
        %1147 = vmatpush.bf16.msra.mxu0 0
        %1148 = vmatpush.bf16.msra.mxu0 0
        %1149 = vmatpush.bf16.msra.mxu0 0
        %1150 = vmatpush.bf16.msra.mxu0 %v1138
        %1151 = vmatmul.bf16.gmra.mxu0 %v1141
        %v1152 = vpop.f32.mrf.mxu0
        %v1153 = vadd.f32 0.0, %v1152
        %v1154 = vpop.f32.mrf.mxu0
        %v1155 = vadd.f32 0.0, %v1154
        %1156 = vdwg.mxu0
        %v1157 = vmul.f32 %v1136, %v1136
        %v1158 = vmul.f32 %v1137, %v1137
        %v1159 = vpack.c.bf16 %v1158, %v1157
        %v1161 = vsel %vm1024, %v1159, 0
        %1163 = vmatpush.bf16.msra.mxu0 0
        %1164 = vmatpush.bf16.msra.mxu0 0
        %1165 = vmatpush.bf16.msra.mxu0 0
        %1166 = vmatpush.bf16.msra.mxu0 0
        %1167 = vmatpush.bf16.msra.mxu0 0
        %1168 = vmatpush.bf16.msra.mxu0 0
        %1169 = vmatpush.bf16.msra.mxu0 0
        %1170 = vmatpush.bf16.msra.mxu0 %v1138
        %1171 = vmatmul.bf16.gmra.mxu0 %v1161
        %v1172 = vpop.f32.mrf.mxu0
        %v1173 = vadd.f32 0.0, %v1172
        %v1174 = vpop.f32.mrf.mxu0
        %v1175 = vadd.f32 0.0, %v1174
        %1176 = vdwg.mxu0
        %v1177 = vsel %vm906, %v1153, %v1173
        %v1178 = vsel %vm906, %v1155, %v1175
        %v1179 = vpack.c.bf16 %v1178, %v1177
        %1182 = vrot.lane.b32.xlu0 %v793, 64
        %v1183 = vpop.permute.xlu0 %1182
        %1184 = vrot.lane.b32.xlu0 %v795, 64
        %v1185 = vpop.permute.xlu0 %1184
        %1190 = vrot.lane.b32.xlu0 %v937, 64
        %v1191 = vpop.permute.xlu0 %1190
        %1192 = vrot.lane.b32.xlu0 %v949, 64
        %v1193 = vpop.permute.xlu0 %1192
        %v1196 = vsel %vm906, %v1183, %v1191
        %v1197 = vsel %vm906, %v1185, %v1193
        %1200 = vrot.lane.b32.xlu0 %v952, 64
        %v1201 = vpop.permute.xlu0 %1200
        %1202 = vrot.lane.b32.xlu0 %v953, 64
        %v1203 = vpop.permute.xlu0 %1202
        %v1206 = vsel %vm906, %v1201, %v1183
        %v1207 = vsel %vm906, %v1203, %v1185
        %v1208 = vsel %vm956, %v1206, 0.0
        %1209 = vadd.xlane.f32.xlu0 %v1208
        %v1210 = vpop.xlane.xlu0 %1209
        %v1211 = vsel %vm956, %v1207, 0.0
        %1212 = vadd.xlane.f32.xlu0 %v1211
        %v1213 = vpop.xlane.xlu0 %1212
        %v1214 = vpack.c.bf16 %v1197, %v1196
        %v1216 = vsel %vm956, %v1214, 0
        %1218 = vmatpush.bf16.xpose.msra.mxu0 0
        %1219 = vmatpush.bf16.xpose.msra.mxu0 0
        %1220 = vmatpush.bf16.xpose.msra.mxu0 0
        %1221 = vmatpush.bf16.xpose.msra.mxu0 0
        %1222 = vmatpush.bf16.xpose.msra.mxu0 0
        %1223 = vmatpush.bf16.xpose.msra.mxu0 0
        %1224 = vmatpush.bf16.xpose.msra.mxu0 0
        %1225 = vmatpush.bf16.xpose.msra.mxu0 %v1216
        %1226 = vmatmul.bf16.gmra.mxu0 %v1216
        %v1227 = vpop.f32.mrf.mxu0
        %v1228 = vadd.f32 0.0, %v1227
        %v1229 = vpop.f32.mrf.mxu0
        %v1230 = vadd.f32 0.0, %v1229
        %1231 = vdwg.mxu0
        %v1232 = vmul.f32 %v1228, 2.0
        %v1233 = vmul.f32 %v1230, 2.0
        %v1234 = vsub.f32 %v1232, %v1210
        %v1235 = vsub.f32 %v1233, %v1213
        %1236 = vxpose.xlu0.b32.start [1/16] %v1210, 128
        %1237 = vxpose.xlu0.b32.cont [2/16] %v1213, 128
        %1238 = vxpose.xlu0.b32.cont [3/16] 0.0, 128
        %1239 = vxpose.xlu0.b32.cont [4/16] 0.0, 128
        %1240 = vxpose.xlu0.b32.cont [5/16] 0.0, 128
        %1241 = vxpose.xlu0.b32.cont [6/16] 0.0, 128
        %1242 = vxpose.xlu0.b32.cont [7/16] 0.0, 128
        %1243 = vxpose.xlu0.b32.cont [8/16] 0.0, 128
        %1244 = vxpose.xlu0.b32.cont [9/16] 0.0, 128
        %1245 = vxpose.xlu0.b32.cont [10/16] 0.0, 128
        %1246 = vxpose.xlu0.b32.cont [11/16] 0.0, 128
        %1247 = vxpose.xlu0.b32.cont [12/16] 0.0, 128
        %1248 = vxpose.xlu0.b32.cont [13/16] 0.0, 128
        %1249 = vxpose.xlu0.b32.cont [14/16] 0.0, 128
        %1250 = vxpose.xlu0.b32.cont [15/16] 0.0, 128
        %1251 = vxpose.xlu0.b32.end [16/16] 0.0, 128
        %v1252 = vpop.trf.xlu0
        %v1253 = vpop.trf.xlu0
        %v1254 = vpop.trf.xlu0
        %v1255 = vpop.trf.xlu0
        %v1256 = vpop.trf.xlu0
        %v1257 = vpop.trf.xlu0
        %v1258 = vpop.trf.xlu0
        %v1259 = vpop.trf.xlu0
        %v1260 = vpop.trf.xlu0
        %v1261 = vpop.trf.xlu0
        %v1262 = vpop.trf.xlu0
        %v1263 = vpop.trf.xlu0
        %v1264 = vpop.trf.xlu0
        %v1265 = vpop.trf.xlu0
        %v1266 = vpop.trf.xlu0
        %v1267 = vpop.trf.xlu0
        %v1268 = vperm.slane %v1252, 0
        %v1269 = vsub.f32 %v1234, %v1268
        %v1270 = vsub.f32 %v1235, %v1268
        %v1271 = vmul.f32 %v1269, 0.17677669
        %v1272 = vmul.f32 %v1270, 0.17677669
        %v1273 = vsel %vm885, %v1271, -1e+32
        %v1274 = vsel %vm886, %v1272, -1e+32
        %v1275 = vsel %vm1024, %v1273, -inf
        %1276 = vmax.xlane.f32.xlu0 %v1275
        %v1277 = vpop.xlane.xlu0 %1276
        %v1278 = vsel %vm1024, %v1274, -inf
        %1279 = vmax.xlane.f32.xlu0 %v1278
        %v1280 = vpop.xlane.xlu0 %1279
        %v1281 = vsub.f32 %v1273, %v1277
        %v1282 = vsub.f32 %v1274, %v1280
        %v1283 = vmul.f32 %v1281, 1.442695
        %v1284 = vpow.pop %v1283
        %v1285 = vmul.f32 %v1282, 1.442695
        %v1286 = vpow.pop %v1285
        %v1287 = vsel %vm1024, %v1284, 0.0
        %1288 = vadd.xlane.f32.xlu0 %v1287
        %v1289 = vpop.xlane.xlu0 %1288
        %v1290 = vsel %vm1024, %v1286, 0.0
        %1291 = vadd.xlane.f32.xlu0 %v1290
        %v1292 = vpop.xlane.xlu0 %1291
        %v1293 = vrcp.pop %v1289
        %v1294 = vrcp.pop %v1292
        %v1295 = vmul.f32 %v1284, %v1293
        %v1296 = vmul.f32 %v1286, %v1294
        %v1297 = vsel %vm887, 0.0, %v1295
        %v1298 = vsel %vm888, 0.0, %v1296
        %v1299 = vpack.c.bf16 %v1298, %v1297
        %v1301 = vsel %vm1024, %v1299, 0
        %1303 = vmatpush.bf16.msra.mxu0 0
        %1304 = vmatpush.bf16.msra.mxu0 0
        %1305 = vmatpush.bf16.msra.mxu0 0
        %1306 = vmatpush.bf16.msra.mxu0 0
        %1307 = vmatpush.bf16.msra.mxu0 0
        %1308 = vmatpush.bf16.msra.mxu0 0
        %1309 = vmatpush.bf16.msra.mxu0 0
        %1310 = vmatpush.bf16.msra.mxu0 %v905
        %1311 = vmatmul.bf16.gmra.mxu0 %v1301
        %v1312 = vpop.f32.mrf.mxu0
        %v1313 = vadd.f32 0.0, %v1312
        %v1314 = vpop.f32.mrf.mxu0
        %v1315 = vadd.f32 0.0, %v1314
        %1316 = vdwg.mxu0
        %v1317 = vmax.f32 %v1313, 0.0
        %v1318 = vmax.f32 %v1315, 0.0
        %v1319 = vmul.f32 %v1317, %v897
        %v1320 = vmul.f32 %v1318, %v898
        %s1321 = sadd.s32 %s1071, 1
        %s1322 = sld [smem:[#allocation3 + %s1321]]
        %v1323 = vstv %s1322
        %v1324 = vmul.f32 %v1319, %v1323
        %v1325 = vmul.f32 %v1320, %v1323
        %v1326 = vrsqrt.pop %v1324
        %v1327 = vmul.f32 %v1326, %v1324
        %v1328 = vmul.f32 %v1327, %v1326
        %v1329 = vmul.f32 0.5, %v1328
        %v1330 = vsub.f32 1.5, %v1329
        %v1331 = vmul.f32 %v1326, %v1330
        %v1332 = vmul.f32 %v1324, %v1331
        %vm1333 = vcmp.eq.f32.partialorder %v1324, inf
        %v1334 = vsel %vm1333, %v1324, %v1332
        %vm1335 = vcmp.eq.f32.partialorder %v1324, 0.0
        %v1336 = vand.u32 %v1324, 2147483648
        %v1337 = vsel %vm1335, %v1336, %v1334
        %v1338 = vrsqrt.pop %v1325
        %v1339 = vmul.f32 %v1338, %v1325
        %v1340 = vmul.f32 %v1339, %v1338
        %v1341 = vmul.f32 0.5, %v1340
        %v1342 = vsub.f32 1.5, %v1341
        %v1343 = vmul.f32 %v1338, %v1342
        %v1344 = vmul.f32 %v1325, %v1343
        %vm1345 = vcmp.eq.f32.partialorder %v1325, inf
        %v1346 = vsel %vm1345, %v1325, %v1344
        %vm1347 = vcmp.eq.f32.partialorder %v1325, 0.0
        %v1348 = vand.u32 %v1325, 2147483648
        %v1349 = vsel %vm1347, %v1348, %v1346
        %v1350 = vsub.f32 0.0, %v1337
        %v1351 = vsub.f32 0.0, %v1349
        %v1352 = vmul.f32 %v1350, 1.442695
        %v1353 = vpow.pop %v1352
        %v1354 = vmul.f32 %v1351, 1.442695
        %v1355 = vpow.pop %v1354
        %v1356 = vmax.f32 %v1353, 1e-05
        %v1357 = vmax.f32 %v1355, 1e-05
        %v1358 = vmin.f32 %v1356, 100000.0
        %v1359 = vmin.f32 %v1357, 100000.0
        %v1360 = vmul.f32 %v1271, %v1358
        %v1361 = vmul.f32 %v1272, %v1359
        %v1362 = vsel %vm885, %v1360, -1e+32
        %v1363 = vsel %vm886, %v1361, -1e+32
        %v1364 = vsel %vm1024, %v1362, -inf
        %1365 = vmax.xlane.f32.xlu0 %v1364
        %v1366 = vpop.xlane.xlu0 %1365
        %v1367 = vsel %vm1024, %v1363, -inf
        %1368 = vmax.xlane.f32.xlu0 %v1367
        %v1369 = vpop.xlane.xlu0 %1368
        %v1370 = vsub.f32 %v1362, %v1366
        %v1371 = vsub.f32 %v1363, %v1369
        %v1372 = vmul.f32 %v1370, 1.442695
        %v1373 = vpow.pop %v1372
        %v1374 = vmul.f32 %v1371, 1.442695
        %v1375 = vpow.pop %v1374
        %v1376 = vsel %vm1024, %v1373, 0.0
        %1377 = vadd.xlane.f32.xlu0 %v1376
        %v1378 = vpop.xlane.xlu0 %1377
        %v1379 = vsel %vm1024, %v1375, 0.0
        %1380 = vadd.xlane.f32.xlu0 %v1379
        %v1381 = vpop.xlane.xlu0 %1380
        %v1382 = vrcp.pop %v1378
        %v1383 = vrcp.pop %v1381
        %v1384 = vmul.f32 %v1373, %v1382
        %v1385 = vmul.f32 %v1375, %v1383
        %v1386 = vsel %vm887, 0.0, %v1384
        %v1387 = vsel %vm888, 0.0, %v1385
        %v1388 = vpack.c.bf16 %v1387, %v1386
        %1390 = vrot.lane.b32.xlu0 %v1138, 64
        %v1391 = vpop.permute.xlu0 %1390
        %v1394 = vsel %vm1024, %v1388, 0
        %1396 = vmatpush.bf16.msra.mxu0 0
        %1397 = vmatpush.bf16.msra.mxu0 0
        %1398 = vmatpush.bf16.msra.mxu0 0
        %1399 = vmatpush.bf16.msra.mxu0 0
        %1400 = vmatpush.bf16.msra.mxu0 0
        %1401 = vmatpush.bf16.msra.mxu0 0
        %1402 = vmatpush.bf16.msra.mxu0 0
        %1403 = vmatpush.bf16.msra.mxu0 %v1391
        %1404 = vmatmul.bf16.gmra.mxu0 %v1394
        %v1405 = vpop.f32.mrf.mxu0
        %v1406 = vadd.f32 0.0, %v1405
        %v1407 = vpop.f32.mrf.mxu0
        %v1408 = vadd.f32 0.0, %v1407
        %1409 = vdwg.mxu0
        %v1410 = vmul.f32 %v1386, %v1386
        %v1411 = vmul.f32 %v1387, %v1387
        %v1412 = vpack.c.bf16 %v1411, %v1410
        %v1414 = vsel %vm1024, %v1412, 0
        %1416 = vmatpush.bf16.msra.mxu0 0
        %1417 = vmatpush.bf16.msra.mxu0 0
        %1418 = vmatpush.bf16.msra.mxu0 0
        %1419 = vmatpush.bf16.msra.mxu0 0
        %1420 = vmatpush.bf16.msra.mxu0 0
        %1421 = vmatpush.bf16.msra.mxu0 0
        %1422 = vmatpush.bf16.msra.mxu0 0
        %1423 = vmatpush.bf16.msra.mxu0 %v1391
        %1424 = vmatmul.bf16.gmra.mxu0 %v1414
        %v1425 = vpop.f32.mrf.mxu0
        %v1426 = vadd.f32 0.0, %v1425
        %v1427 = vpop.f32.mrf.mxu0
        %v1428 = vadd.f32 0.0, %v1427
        %1429 = vdwg.mxu0
        %v1430 = vsel %vm906, %v1406, %v1426
        %v1431 = vsel %vm906, %v1408, %v1428
        %v1432 = vpack.c.bf16 %v1431, %v1430
        %v1441 = vunpack.c.l.b16 %v916
        %v1442 = vunpack.c.l.b16 %v917
        %v1443 = vunpack.c.l.b16 %v918
        %v1444 = vunpack.c.l.b16 %v919
        %v1445 = vunpack.c.l.b16 %v920
        %v1446 = vunpack.c.l.b16 %v921
        %v1447 = vunpack.c.l.b16 %v922
        %v1448 = vunpack.c.l.b16 %v923
        %v1449 = vpack.c.b16 %v1442, %v1441
        %v1450 = vpack.c.b16 %v1444, %v1443
        %v1451 = vpack.c.b16 %v1446, %v1445
        %v1452 = vpack.c.b16 %v1448, %v1447
        %v1458 = vsel %vm956, %v1432, 0
        %1460 = vmatpush.bf16.msra.mxu0 0
        %1461 = vmatpush.bf16.msra.mxu0 0
        %1462 = vmatpush.bf16.msra.mxu0 0
        %1463 = vmatpush.bf16.msra.mxu0 0
        %1464 = vmatpush.bf16.msra.mxu0 %v1452
        %1465 = vmatpush.bf16.msra.mxu0 %v1451
        %1466 = vmatpush.bf16.msra.mxu0 %v1450
        %1467 = vmatpush.bf16.msra.mxu0 %v1449
        %1468 = vmatmul.bf16.gmra.mxu0 %v1458
        %v1469 = vpop.f32.mrf.mxu0
        %v1470 = vadd.f32 0.0, %v1469
        %v1471 = vpop.f32.mrf.mxu0
        %v1472 = vadd.f32 0.0, %v1471
        %1473 = vdwg.mxu0
        %v1482 = vunpack.c.l.b16 %v908
        %v1483 = vunpack.c.l.b16 %v909
        %v1484 = vunpack.c.l.b16 %v910
        %v1485 = vunpack.c.l.b16 %v911
        %v1486 = vunpack.c.l.b16 %v912
        %v1487 = vunpack.c.l.b16 %v913
        %v1488 = vunpack.c.l.b16 %v914
        %v1489 = vunpack.c.l.b16 %v915
        %v1490 = vpack.c.b16 %v1483, %v1482
        %v1491 = vpack.c.b16 %v1485, %v1484
        %v1492 = vpack.c.b16 %v1487, %v1486
        %v1493 = vpack.c.b16 %v1489, %v1488
        %v1499 = vsel %vm956, %v1179, 0
        %1501 = vmatpush.bf16.msra.mxu0 0
        %1502 = vmatpush.bf16.msra.mxu0 0
        %1503 = vmatpush.bf16.msra.mxu0 0
        %1504 = vmatpush.bf16.msra.mxu0 0
        %1505 = vmatpush.bf16.msra.mxu0 %v1493
        %1506 = vmatpush.bf16.msra.mxu0 %v1492
        %1507 = vmatpush.bf16.msra.mxu0 %v1491
        %1508 = vmatpush.bf16.msra.mxu0 %v1490
        %1509 = vmatmul.bf16.gmra.mxu0 %v1499
        %v1510 = vpop.f32.mrf.mxu0
        %v1511 = vadd.f32 %v1470, %v1510
        %v1512 = vpop.f32.mrf.mxu0
        %v1513 = vadd.f32 %v1472, %v1512
        %1514 = vdwg.mxu0
        %v1515 = vld [vmem:[%s689] sm:$0x1]
        %v1517 = vperm.slane %v1515, 0
        %v1519 = vadd.f32 %v1511, %v1517
        %v1520 = vadd.f32 %v1513, %v1517
        %v1521 = vadd.f32 %v710, %v1519
        %v1522 = vadd.f32 %v711, %v1520
        %v1523 = vmin.f32 %v1521, 0.0
        %v1524 = vmin.f32 %v1522, 0.0
        %v1525 = vmul.f32 %v1523, 1.442695
        %v1526 = vpow.pop %v1525
        %v1527 = vmul.f32 %v1524, 1.442695
        %v1528 = vpow.pop %v1527
        %v1529 = vmax.f32 %v1521, 0.0
        %v1530 = vmax.f32 %v1522, 0.0
        %v1531 = vadd.f32 %v1526, %v1529
        %v1532 = vadd.f32 %v1528, %v1530
        %v1533 = vsel %vm907, %v1521, %v1531
        %v1534 = vsel %vm907, %v1522, %v1532
        %v1535 = vsel %vm907, %v1521, 0.0
        %v1536 = vsel %vm907, %v1522, 0.0
        %v1537 = vsub.f32 %v1533, %v1535
        %v1538 = vsub.f32 %v1534, %v1536
        %1539 = vadd.xlane.f32.xlu0 %v1535
        %v1540 = vpop.xlane.xlu0 %1539
        %1541 = vadd.xlane.f32.xlu0 %v1536
        %v1542 = vpop.xlane.xlu0 %1541
        %v1543 = vmul.f32 %v1540, 0.015625
        %v1544 = vmul.f32 %v1542, 0.015625
        %1545 = vadd.xlane.f32.xlu0 %v1537
        %v1546 = vpop.xlane.xlu0 %1545
        %1547 = vadd.xlane.f32.xlu0 %v1538
        %v1548 = vpop.xlane.xlu0 %1547
        %v1549 = vmul.f32 %v1546, 0.015625
        %v1550 = vmul.f32 %v1548, 0.015625
        %v1551 = vsel %vm907, %v1543, %v1549
        %v1552 = vsel %vm907, %v1544, %v1550
        %v1553 = vsub.f32 %v1533, %v1551
        %v1554 = vsub.f32 %v1534, %v1552
        %v1555 = vsel %vm907, %v1553, 0.0
        %v1556 = vsel %vm907, %v1554, 0.0
        %v1557 = vsub.f32 %v1553, %v1555
        %v1558 = vsub.f32 %v1554, %v1556
        %v1559 = vmul.f32 %v1555, %v1555
        %v1560 = vmul.f32 %v1556, %v1556
        %1561 = vadd.xlane.f32.xlu0 %v1559
        %v1562 = vpop.xlane.xlu0 %1561
        %1563 = vadd.xlane.f32.xlu0 %v1560
        %v1564 = vpop.xlane.xlu0 %1563
        %v1565 = vmul.f32 %v1562, 0.015625
        %v1566 = vmul.f32 %v1564, 0.015625
        %v1567 = vmul.f32 %v1557, %v1557
        %v1568 = vmul.f32 %v1558, %v1558
        %1569 = vadd.xlane.f32.xlu0 %v1567
        %v1570 = vpop.xlane.xlu0 %1569
        %1571 = vadd.xlane.f32.xlu0 %v1568
        %v1572 = vpop.xlane.xlu0 %1571
        %v1573 = vmul.f32 %v1570, 0.015625
        %v1574 = vmul.f32 %v1572, 0.015625
        %v1575 = vsel %vm907, %v1565, %v1573
        %v1576 = vsel %vm907, %v1566, %v1574
        %v1577 = vadd.f32 %v1575, 1e-05
        %v1578 = vadd.f32 %v1576, 1e-05
        %v1579 = vrsqrt.pop %v1577
        %v1580 = vmul.f32 %v1579, %v1577
        %v1581 = vmul.f32 %v1580, %v1579
        %v1582 = vmul.f32 0.5, %v1581
        %v1583 = vsub.f32 1.5, %v1582
        %v1584 = vmul.f32 %v1579, %v1583
        %vm1585 = vweird.f32 %v1577
        %vm1586 = vweird.f32 %v1579
        %vm1587 = vmor %vm1585, %vm1586
        %v1588 = vsel %vm1587, %v1579, %v1584
        %v1589 = vrsqrt.pop %v1578
        %v1590 = vmul.f32 %v1589, %v1578
        %v1591 = vmul.f32 %v1590, %v1589
        %v1592 = vmul.f32 0.5, %v1591
        %v1593 = vsub.f32 1.5, %v1592
        %v1594 = vmul.f32 %v1589, %v1593
        %vm1595 = vweird.f32 %v1578
        %vm1596 = vweird.f32 %v1589
        %vm1597 = vmor %vm1595, %vm1596
        %v1598 = vsel %vm1597, %v1589, %v1594
        %v1599 = vmul.f32 %v1553, %v1588
        %v1600 = vmul.f32 %v1554, %v1598
        %v1601 = vpack.c.bf16 %v1600, %v1599
        %v1602 = vld [vmem:[%s556] sm:$0xf]
        %v1603 = vld [vmem:[%s556 + $0x4] sm:$0xf]
        %v1604 = vld [vmem:[%s556 + $0x8] sm:$0xf]
        %v1605 = vld [vmem:[%s556 + $0xc] sm:$0xf]
        %v1606 = vld [vmem:[%s556 + $0x10] sm:$0xf]
        %v1607 = vld [vmem:[%s556 + $0x14] sm:$0xf]
        %v1608 = vld [vmem:[%s556 + $0x18] sm:$0xf]
        %v1609 = vld [vmem:[%s556 + $0x1c] sm:$0xf]
        %v1610 = vld [vmem:[%s556 + $0x20] sm:$0xf]
        %v1611 = vld [vmem:[%s556 + $0x24] sm:$0xf]
        %v1612 = vld [vmem:[%s556 + $0x28] sm:$0xf]
        %v1613 = vld [vmem:[%s556 + $0x2c] sm:$0xf]
        %v1614 = vld [vmem:[%s556 + $0x30] sm:$0xf]
        %v1615 = vld [vmem:[%s556 + $0x34] sm:$0xf]
        %v1616 = vld [vmem:[%s556 + $0x38] sm:$0xf]
        %v1617 = vld [vmem:[%s556 + $0x3c] sm:$0xf]
        %v1618 = vld [vmem:[%s692] sm:$0x1]
        %v1620 = vperm.slane %v1618, 0
        %v1638 = vunpack.c.l.b16 %v1602
        %v1639 = vunpack.c.l.b16 %v1603
        %v1640 = vunpack.c.l.b16 %v1604
        %v1641 = vunpack.c.l.b16 %v1605
        %v1642 = vunpack.c.l.b16 %v1606
        %v1643 = vunpack.c.l.b16 %v1607
        %v1644 = vunpack.c.l.b16 %v1608
        %v1645 = vunpack.c.l.b16 %v1609
        %v1646 = vunpack.c.l.b16 %v1610
        %v1647 = vunpack.c.l.b16 %v1611
        %v1648 = vunpack.c.l.b16 %v1612
        %v1649 = vunpack.c.l.b16 %v1613
        %v1650 = vunpack.c.l.b16 %v1614
        %v1651 = vunpack.c.l.b16 %v1615
        %v1652 = vunpack.c.l.b16 %v1616
        %v1653 = vunpack.c.l.b16 %v1617
        %v1654 = vpack.c.b16 %v1639, %v1638
        %v1655 = vpack.c.b16 %v1641, %v1640
        %v1656 = vpack.c.b16 %v1643, %v1642
        %v1657 = vpack.c.b16 %v1645, %v1644
        %v1658 = vpack.c.b16 %v1647, %v1646
        %v1659 = vpack.c.b16 %v1649, %v1648
        %v1660 = vpack.c.b16 %v1651, %v1650
        %v1661 = vpack.c.b16 %v1653, %v1652
        %1670 = vmatpush.bf16.msra.mxu0 %v1661
        %1671 = vmatpush.bf16.msra.mxu0 %v1660
        %1672 = vmatpush.bf16.msra.mxu0 %v1659
        %1673 = vmatpush.bf16.msra.mxu0 %v1658
        %1674 = vmatpush.bf16.msra.mxu0 %v1657
        %1675 = vmatpush.bf16.msra.mxu0 %v1656
        %1676 = vmatpush.bf16.msra.mxu0 %v1655
        %1677 = vmatpush.bf16.msra.mxu0 %v1654
        %1678 = vmatmul.bf16.gmra.mxu0 %v1601
        %v1679 = vpop.f32.mrf.mxu0
        %v1680 = vadd.f32 %v1620, %v1679
        %v1681 = vpop.f32.mrf.mxu0
        %v1682 = vadd.f32 %v1620, %v1681
        %1683 = vdwg.mxu0
        %v1684 = vmax.f32 %v1680, 0.0
        %v1685 = vmax.f32 %v1682, 0.0
        %v1686 = vpack.c.bf16 %v1685, %v1684
        %v1687 = vld [vmem:[%s566] sm:$0xf]
        %v1688 = vld [vmem:[%s566 + $0x4] sm:$0xf]
        %v1689 = vld [vmem:[%s566 + $0x8] sm:$0xf]
        %v1690 = vld [vmem:[%s566 + $0xc] sm:$0xf]
        %v1691 = vld [vmem:[%s566 + $0x10] sm:$0xf]
        %v1692 = vld [vmem:[%s566 + $0x14] sm:$0xf]
        %v1693 = vld [vmem:[%s566 + $0x18] sm:$0xf]
        %v1694 = vld [vmem:[%s566 + $0x1c] sm:$0xf]
        %v1695 = vld [vmem:[%s566 + $0x20] sm:$0xf]
        %v1696 = vld [vmem:[%s566 + $0x24] sm:$0xf]
        %v1697 = vld [vmem:[%s566 + $0x28] sm:$0xf]
        %v1698 = vld [vmem:[%s566 + $0x2c] sm:$0xf]
        %v1699 = vld [vmem:[%s566 + $0x30] sm:$0xf]
        %v1700 = vld [vmem:[%s566 + $0x34] sm:$0xf]
        %v1701 = vld [vmem:[%s566 + $0x38] sm:$0xf]
        %v1702 = vld [vmem:[%s566 + $0x3c] sm:$0xf]
        %v1703 = vld [vmem:[%s695] sm:$0x1]
        %v1705 = vperm.slane %v1703, 0
        %v1723 = vunpack.c.l.b16 %v1687
        %v1724 = vunpack.c.l.b16 %v1688
        %v1725 = vunpack.c.l.b16 %v1689
        %v1726 = vunpack.c.l.b16 %v1690
        %v1727 = vunpack.c.l.b16 %v1691
        %v1728 = vunpack.c.l.b16 %v1692
        %v1729 = vunpack.c.l.b16 %v1693
        %v1730 = vunpack.c.l.b16 %v1694
        %v1731 = vunpack.c.l.b16 %v1695
        %v1732 = vunpack.c.l.b16 %v1696
        %v1733 = vunpack.c.l.b16 %v1697
        %v1734 = vunpack.c.l.b16 %v1698
        %v1735 = vunpack.c.l.b16 %v1699
        %v1736 = vunpack.c.l.b16 %v1700
        %v1737 = vunpack.c.l.b16 %v1701
        %v1738 = vunpack.c.l.b16 %v1702
        %v1739 = vpack.c.b16 %v1724, %v1723
        %v1740 = vpack.c.b16 %v1726, %v1725
        %v1741 = vpack.c.b16 %v1728, %v1727
        %v1742 = vpack.c.b16 %v1730, %v1729
        %v1743 = vpack.c.b16 %v1732, %v1731
        %v1744 = vpack.c.b16 %v1734, %v1733
        %v1745 = vpack.c.b16 %v1736, %v1735
        %v1746 = vpack.c.b16 %v1738, %v1737
        %1755 = vmatpush.bf16.msra.mxu0 %v1746
        %1756 = vmatpush.bf16.msra.mxu0 %v1745
        %1757 = vmatpush.bf16.msra.mxu0 %v1744
        %1758 = vmatpush.bf16.msra.mxu0 %v1743
        %1759 = vmatpush.bf16.msra.mxu0 %v1742
        %1760 = vmatpush.bf16.msra.mxu0 %v1741
        %1761 = vmatpush.bf16.msra.mxu0 %v1740
        %1762 = vmatpush.bf16.msra.mxu0 %v1739
        %1763 = vmatmul.bf16.gmra.mxu0 %v1686
        %v1764 = vpop.f32.mrf.mxu0
        %v1765 = vadd.f32 %v1705, %v1764
        %v1766 = vpop.f32.mrf.mxu0
        %v1767 = vadd.f32 %v1705, %v1766
        %1768 = vdwg.mxu0
        %v1769 = vmin.f32 %v1765, 0.0
        %v1770 = vmin.f32 %v1767, 0.0
        %v1771 = vmul.f32 %v1769, 1.442695
        %v1772 = vpow.pop %v1771
        %v1773 = vmul.f32 %v1770, 1.442695
        %v1774 = vpow.pop %v1773
        %v1775 = vmax.f32 %v1765, 0.0
        %v1776 = vmax.f32 %v1767, 0.0
        %v1777 = vadd.f32 %v1772, %v1775
        %v1778 = vadd.f32 %v1774, %v1776
        %v1779 = vsel %vm907, %v1765, %v1777
        %v1780 = vsel %vm907, %v1767, %v1778
        %v1781 = vsel %vm907, %v1765, 0.0
        %v1782 = vsel %vm907, %v1767, 0.0
        %v1783 = vsub.f32 %v1779, %v1781
        %v1784 = vsub.f32 %v1780, %v1782
        %1785 = vadd.xlane.f32.xlu0 %v1781
        %v1786 = vpop.xlane.xlu0 %1785
        %1787 = vadd.xlane.f32.xlu0 %v1782
        %v1788 = vpop.xlane.xlu0 %1787
        %v1789 = vmul.f32 %v1786, 0.015625
        %v1790 = vmul.f32 %v1788, 0.015625
        %1791 = vadd.xlane.f32.xlu0 %v1783
        %v1792 = vpop.xlane.xlu0 %1791
        %1793 = vadd.xlane.f32.xlu0 %v1784
        %v1794 = vpop.xlane.xlu0 %1793
        %v1795 = vmul.f32 %v1792, 0.015625
        %v1796 = vmul.f32 %v1794, 0.015625
        %v1797 = vsel %vm907, %v1789, %v1795
        %v1798 = vsel %vm907, %v1790, %v1796
        %v1799 = vsub.f32 %v1779, %v1797
        %v1800 = vsub.f32 %v1780, %v1798
        %v1801 = vsel %vm907, %v1799, 0.0
        %v1802 = vsel %vm907, %v1800, 0.0
        %v1803 = vsub.f32 %v1799, %v1801
        %v1804 = vsub.f32 %v1800, %v1802
        %v1805 = vmul.f32 %v1801, %v1801
        %v1806 = vmul.f32 %v1802, %v1802
        %1807 = vadd.xlane.f32.xlu0 %v1805
        %v1808 = vpop.xlane.xlu0 %1807
        %1809 = vadd.xlane.f32.xlu0 %v1806
        %v1810 = vpop.xlane.xlu0 %1809
        %v1811 = vmul.f32 %v1808, 0.015625
        %v1812 = vmul.f32 %v1810, 0.015625
        %v1813 = vmul.f32 %v1803, %v1803
        %v1814 = vmul.f32 %v1804, %v1804
        %1815 = vadd.xlane.f32.xlu0 %v1813
        %v1816 = vpop.xlane.xlu0 %1815
        %1817 = vadd.xlane.f32.xlu0 %v1814
        %v1818 = vpop.xlane.xlu0 %1817
        %v1819 = vmul.f32 %v1816, 0.015625
        %v1820 = vmul.f32 %v1818, 0.015625
        %v1821 = vsel %vm907, %v1811, %v1819
        %v1822 = vsel %vm907, %v1812, %v1820
        %v1823 = vadd.f32 %v1821, 1e-05
        %v1824 = vadd.f32 %v1822, 1e-05
        %v1825 = vrsqrt.pop %v1823
        %v1826 = vmul.f32 %v1825, %v1823
        %v1827 = vmul.f32 %v1826, %v1825
        %v1828 = vmul.f32 0.5, %v1827
        %v1829 = vsub.f32 1.5, %v1828
        %v1830 = vmul.f32 %v1825, %v1829
        %vm1831 = vweird.f32 %v1823
        %vm1832 = vweird.f32 %v1825
        %vm1833 = vmor %vm1831, %vm1832
        %v1834 = vsel %vm1833, %v1825, %v1830
        %v1835 = vrsqrt.pop %v1824
        %v1836 = vmul.f32 %v1835, %v1824
        %v1837 = vmul.f32 %v1836, %v1835
        %v1838 = vmul.f32 0.5, %v1837
        %v1839 = vsub.f32 1.5, %v1838
        %v1840 = vmul.f32 %v1835, %v1839
        %vm1841 = vweird.f32 %v1824
        %vm1842 = vweird.f32 %v1835
        %vm1843 = vmor %vm1841, %vm1842
        %v1844 = vsel %vm1843, %v1835, %v1840
        %v1845 = vmul.f32 %v1799, %v1834
        %v1846 = vmul.f32 %v1800, %v1844
        %1847 = vst [vmem:[#allocation2] sm:$0xff] %v1845
        %1848 = vst [vmem:[#allocation2 + $0x8] sm:$0xff] %v1846
        %p1849 = scmp.eq.s32.totalorder %s36, 1
        // Predicated region
        $region89: #{architecture_forward.1} parent=71 // pred_check
          %p1850 = pneg %p1849
        $region90: #{architecture_forward.1} parent=71 // pred_check_branch
          %1852 = sbr.rel (%p1850) target = $region92
        $region91: #{architecture_forward.1} parent=71 // pred_region
          %1853 = vst [vmem:[%s700] sm:$0xff] %v1845
          %1854 = vst [vmem:[%s700 + $0x8] sm:$0xff] %v1846
        $region92: #{architecture_forward.1} parent=71 // pred_fallthru
          _
        %p1855 = scmp.lt.s32.totalorder %s35, 1
        %s1856 = scalar_select %p1855, %s35, 1
        %s1857 = smul.addr %s1856, 2
        %s1858 = smul.addr %s1857, 8
        %s1859 = scalar_lea.vmem %s13, %s1858
        // Predicated region
        $region93: #{architecture_forward.1} parent=71 // pred_check
          %p1860 = pneg %p394
        $region94: #{architecture_forward.1} parent=71 // pred_check_branch
          %1862 = sbr.rel (%p1860) target = $region96
        $region95: #{architecture_forward.1} parent=71 // pred_region
          _
        $region96: #{architecture_forward.1} parent=71 // pred_fallthru
          _
      $region72: #{architecture_forward.1} parent=5 // pred_fallthru
        _
      %p1863 = scmp.le.s32.totalorder 2, %s26
      // Predicated region
      $region97: #{architecture_forward.1} parent=5 // pred_check
        %p1864 = pneg %p1863
      $region98: #{architecture_forward.1} parent=5 // pred_check_branch
        %1866 = sbr.rel (%p1864) target = $region100
      $region99: #{architecture_forward.1} parent=5 // pred_region
        %s1867 = ssub.s32 %s26, 2
        // Predicated region
        $region101: #{architecture_forward.1} parent=99 // pred_check
          %p1868 = pneg %p400
        $region102: #{architecture_forward.1} parent=99 // pred_check_branch
          %1870 = sbr.rel (%p1868) target = $region104
        $region103: #{architecture_forward.1} parent=99 // pred_region
          %p1871 = scmp.lt.s32.totalorder %s37, 1
          %s1872 = scalar_select %p1871, %s37, 1
          %s1873 = smul.addr %s1872, 2
          %s1874 = smul.addr %s1873, 8
          %s1875 = scalar_lea.vmem %s13, %s1874
        $region104: #{architecture_forward.1} parent=99 // pred_fallthru
          _
      $region100: #{architecture_forward.1} parent=5 // pred_fallthru
        _
    $region6: #{architecture_forward.1} parent=1 // loop_footer
      %s30 = sadd.s32 1, %s26
    $region7: #{architecture_forward.1} parent=1 // loop_footer_branch
      %25 = sbr.rel target = $region3
    $region8: #{architecture_forward.1} parent=1 // loop_exit
      _
    %1876 = vsyncpa [#allocation4], 1
    %s1877 = scalar_lea.sflag [#allocation4], 1
    %1878 = vsyncpa %s1877, 1
    %1879 = vsyncpa [#allocation8], 1
    %s1880 = scalar_lea.sflag [#allocation8], 1
    %1881 = vsyncpa %s1880, 1
    %1882 = vsyncpa [#allocation5], 1
    %s1883 = scalar_lea.sflag [#allocation5], 1
    %1884 = vsyncpa %s1883, 1

</llo_original>
